<compile_context>
chip_gen: v5e
topology: v5e:2x2
jax: 0.10.0
libtpu: 0.0.40
codegen_flags: <defaults>
</compile_context>

<pallas_src>
import jax
import jax.numpy as jnp
from jax.experimental import pallas as pl
from jax.experimental.pallas import tpu as pltpu


def _round_up(x, m):
    return (x + m - 1) // m * m


def make_conv2d_kernel(Nb, Cin, H, W, Cout, KH, KW):
    Ho = H - KH + 1
    Wo = W - KW + 1
    HW = H * W
    # Pad the flattened spatial axis so every tap slice [s : s + HW] stays in
    # bounds (max shift = (KH-1)*W + (KW-1)); keep the lane dim 128-aligned.
    HWp = _round_up(HW + (KH - 1) * W + (KW - 1), 128)
    K = Cin * KH * KW

    def conv_kernel(x_ref, wb_ref, b_ref, o_ref, xpad_ref):
        # x_ref   : (Nb, Cin, HW)   unpadded, lane-flattened input images
        # wb_ref  : (K, Cout, HW)   lane-dense pre-broadcast weights (resident)
        # b_ref   : (Cout, HW)      lane-dense pre-broadcast bias (resident)
        # o_ref   : (Nb, Cout, HW)  lane-dense output slab
        # xpad_ref: (Cin, HWp)      VMEM scratch, spatial zero-pad done in-kernel
        #
        # Zero the pad tail once per grid step (tail is lane-aligned: HWp-HW % 128 == 0).
        xpad_ref[:, HW:] = jnp.zeros((Cin, HWp - HW), jnp.float32)
        for n in range(Nb):  # Nb is tiny -> full static unroll
            xpad_ref[:, :HW] = x_ref[n]
            acc = b_ref[...]  # (Cout, HW) f32 accumulator, bias pre-added
            for cin in range(Cin):
                # One hoisted sublane broadcast per (image, cin) instead of one
                # implicit 1->Cout splat per tap.
                xcb = jnp.broadcast_to(xpad_ref[cin:cin + 1, :], (Cout, HWp))
                for kh in range(KH):
                    for kw in range(KW):
                        j = (cin * KH + kh) * KW + kw  # weight tap index
                        s = kh * W + kw                # flat spatial shift of tap
                        # Plain vreg FMA: both operands already (Cout, HW)-shaped.
                        acc = acc + wb_ref[j] * xcb[:, s:s + HW]
            # TODO(synk): a (Nb*Cout, HW) flattened accumulator (Nb multiple of 4)
            # would remove the 6/16 dead sublane rows of Cout=10; skipped since it
            # requires an Nb-times-larger weight slab and per-image sublane tiling.
            o_ref[n] = acc.astype(o_ref.dtype)

    return conv_kernel, (Ho, Wo, HW, HWp, K)


def net_name_forward(x_nchw, weight, bias, *, num_blocks=None):
    """x_nchw: (N, Cin, H, W) f32; weight: (Cout, Cin, KH, KW); bias: (Cout,).
    Returns (N, Cout, Ho, Wo) f32, matching nn.Conv2d(3, 10, kernel_size=3).

    num_blocks: number of grid steps (images are split Nb = N // num_blocks per
    step). Default keeps 2 blocks (feeds both v7x TensorCores); pass 1 on
    single-TC chips (v5e/v6e) to fold the whole batch into one step."""
    N, Cin, H, W = x_nchw.shape
    Cout, _, KH, KW = weight.shape

    if num_blocks is None:
        num_blocks = min(N, 2)
    if N % num_blocks != 0:
        num_blocks = 1
    Nb = N // num_blocks

    kernel, (Ho, Wo, HW, HWp, K) = make_conv2d_kernel(Nb, Cin, H, W, Cout, KH, KW)

    # Wrapper-side prep: reshapes + one-time broadcasts only — no transposes, no pad.
    xf = x_nchw.reshape(N, Cin, HW)
    # Lane-dense weight slab: wb[j, c, :] = weight[c].reshape(K)[j]  (K-order cin,kh,kw)
    wb = jnp.broadcast_to(
        weight.astype(jnp.float32).reshape(Cout, K).T[:, :, None], (K, Cout, HW))
    bb = jnp.broadcast_to(bias.astype(jnp.float32)[:, None], (Cout, HW))

    flops = 2 * N * Ho * Wo * K * Cout
    bytes_accessed = 4 * (xf.size + wb.size + bb.size + 3 * N * Cout * HW)

    out_flat = pl.pallas_call(
        kernel,
        out_shape=jax.ShapeDtypeStruct((N, Cout, HW), jnp.float32),
        grid=(num_blocks,),
        in_specs=[
            pl.BlockSpec((Nb, Cin, HW), lambda i: (i, 0, 0)),
            # Constant index_maps -> DMA'd once, stay resident across all steps.
            pl.BlockSpec((K, Cout, HW), lambda i: (0, 0, 0)),
            pl.BlockSpec((Cout, HW), lambda i: (0, 0)),
        ],
        out_specs=pl.BlockSpec((Nb, Cout, HW), lambda i: (i, 0, 0)),
        scratch_shapes=[pltpu.VMEM((Cin, HWp), jnp.float32)],
        compiler_params=pltpu.CompilerParams(dimension_semantics=("parallel",)),
        cost_estimate=pl.CostEstimate(flops=flops, transcendentals=0,
                                      bytes_accessed=bytes_accessed),
    )(xf, wb, bb)

    # Lane-dense slab -> NCHW: reshape + slice of the valid window (no transpose).
    return out_flat.reshape(N, Cout, H, W)[:, :, :Ho, :Wo]


if __name__ == "__main__":
    key = jax.random.PRNGKey(0)
    k_x, k_w, k_b = jax.random.split(key, 3)

    # Shapes implied by nn.Conv2d(in_channels=3, out_channels=10, kernel_size=3).
    # N=4 exercises the multi-image-per-step path (2 grid blocks x Nb=2 images).
    N, Cin, H, W = 4, 3, 16, 16
    Cout, KH, KW = 10, 3, 3

    x = jax.random.normal(k_x, (N, Cin, H, W), dtype=jnp.float32)

    # Deterministic parameter init (PyTorch-style uniform bound 1/sqrt(fan_in)).
    fan_in = Cin * KH * KW
    bound = 1.0 / (fan_in ** 0.5)
    weight = jax.random.uniform(k_w, (Cout, Cin, KH, KW), jnp.float32, -bound, bound)
    bias = jax.random.uniform(k_b, (Cout,), jnp.float32, -bound, bound)

    out = net_name_forward(x, weight, bias)
    out = jax.block_until_ready(out)

    # Sanity check against XLA's conv (reference only, not part of the kernel).
    ref = jax.lax.conv_general_dilated(
        x, weight, window_strides=(1, 1), padding="VALID",
        dimension_numbers=("NCHW", "OIHW", "NCHW"),
    ) + bias.reshape(1, Cout, 1, 1)
    assert out.shape == (N, Cout, H - KH + 1, W - KW + 1)
    assert jnp.allclose(out, ref, atol=1e-4, rtol=1e-4)

    print("KERNEL_OK")
</pallas_src>

<mosaic_0001>
module attributes {stable_mosaic.version = 11 : i64} {
  func.func @conv_kernel(%arg0: i32, %arg1: memref<2x3x256xf32, #tpu.memory_space<vmem>>, %arg2: memref<27x10x256xf32, #tpu.memory_space<vmem>>, %arg3: memref<10x256xf32, #tpu.memory_space<vmem>>, %arg4: memref<2x10x256xf32, #tpu.memory_space<vmem>>, %arg5: memref<3x384xf32, #tpu.memory_space<vmem>>) attributes {dimension_semantics = [#tpu.dimension_semantics<parallel>], iteration_bounds = array<i64: 2>, scalar_prefetch = 0 : i64, scratch_operands = 1 : i64, tpu.core_type = #tpu.core_type<tc>, window_params = [{transform_indices = @transform_0, window_bounds = array<i64: 2, 3, 256>}, {pipeline_mode = #tpu.pipeline_mode<synchronous>, transform_indices = @transform_1, window_bounds = array<i64: 27, 10, 256>}, {pipeline_mode = #tpu.pipeline_mode<synchronous>, transform_indices = @transform_2, window_bounds = array<i64: 10, 256>}, {transform_indices = @transform_3, window_bounds = array<i64: 2, 10, 256>}]} {
    %cst = arith.constant 0.000000e+00 : f32
    %0 = vector.broadcast %cst : f32 to vector<3x128xf32>
    %c0 = arith.constant 0 : index
    %c256 = arith.constant 256 : index
    %1 = vector.load %arg5[%c0, %c256] : memref<3x384xf32, #tpu.memory_space<vmem>>, vector<3x128xf32>
    tpu.vector_store %arg5[%c0, %c256], %0 {strides = array<i32>} : memref<3x384xf32, #tpu.memory_space<vmem>>, vector<3x128xf32>,
    %c0_0 = arith.constant 0 : index
    %c0_1 = arith.constant 0 : index
    %c0_2 = arith.constant 0 : index
    %2 = vector.load %arg1[%c0_0, %c0_1, %c0_2] : memref<2x3x256xf32, #tpu.memory_space<vmem>>, vector<1x3x256xf32>
    %3 = vector.shape_cast %2 : vector<1x3x256xf32> to vector<3x256xf32>
    %c0_3 = arith.constant 0 : index
    %c0_4 = arith.constant 0 : index
    %4 = vector.load %arg5[%c0_3, %c0_4] : memref<3x384xf32, #tpu.memory_space<vmem>>, vector<3x256xf32>
    tpu.vector_store %arg5[%c0_3, %c0_4], %3 {strides = array<i32>} : memref<3x384xf32, #tpu.memory_space<vmem>>, vector<3x256xf32>,
    %c0_5 = arith.constant 0 : index
    %c0_6 = arith.constant 0 : index
    %5 = vector.load %arg3[%c0_5, %c0_6] : memref<10x256xf32, #tpu.memory_space<vmem>>, vector<10x256xf32>
    %c0_7 = arith.constant 0 : index
    %c0_8 = arith.constant 0 : index
    %6 = vector.load %arg5[%c0_7, %c0_8] : memref<3x384xf32, #tpu.memory_space<vmem>>, vector<1x384xf32>
    %7 = vector.shape_cast %6 : vector<1x384xf32> to vector<1x384xf32>
    %8 = vector.broadcast %7 : vector<1x384xf32> to vector<10x384xf32>
    %c0_9 = arith.constant 0 : index
    %c0_10 = arith.constant 0 : index
    %c0_11 = arith.constant 0 : index
    %9 = vector.load %arg2[%c0_9, %c0_10, %c0_11] : memref<27x10x256xf32, #tpu.memory_space<vmem>>, vector<1x10x256xf32>
    %10 = vector.shape_cast %9 : vector<1x10x256xf32> to vector<10x256xf32>
    %11 = vector.extract_strided_slice %8 {offsets = [0, 0], sizes = [10, 256], strides = [1, 1]} : vector<10x384xf32> to vector<10x256xf32>
    %12 = arith.mulf %10, %11 : vector<10x256xf32>
    %13 = arith.addf %5, %12 : vector<10x256xf32>
    %c1 = arith.constant 1 : index
    %c0_12 = arith.constant 0 : index
    %c0_13 = arith.constant 0 : index
    %14 = vector.load %arg2[%c1, %c0_12, %c0_13] : memref<27x10x256xf32, #tpu.memory_space<vmem>>, vector<1x10x256xf32>
    %15 = vector.shape_cast %14 : vector<1x10x256xf32> to vector<10x256xf32>
    %16 = vector.extract_strided_slice %8 {offsets = [0, 1], sizes = [10, 256], strides = [1, 1]} : vector<10x384xf32> to vector<10x256xf32>
    %17 = arith.mulf %15, %16 : vector<10x256xf32>
    %18 = arith.addf %13, %17 : vector<10x256xf32>
    %c2 = arith.constant 2 : index
    %c0_14 = arith.constant 0 : index
    %c0_15 = arith.constant 0 : index
    %19 = vector.load %arg2[%c2, %c0_14, %c0_15] : memref<27x10x256xf32, #tpu.memory_space<vmem>>, vector<1x10x256xf32>
    %20 = vector.shape_cast %19 : vector<1x10x256xf32> to vector<10x256xf32>
    %21 = vector.extract_strided_slice %8 {offsets = [0, 2], sizes = [10, 256], strides = [1, 1]} : vector<10x384xf32> to vector<10x256xf32>
    %22 = arith.mulf %20, %21 : vector<10x256xf32>
    %23 = arith.addf %18, %22 : vector<10x256xf32>
    %c3 = arith.constant 3 : index
    %c0_16 = arith.constant 0 : index
    %c0_17 = arith.constant 0 : index
    %24 = vector.load %arg2[%c3, %c0_16, %c0_17] : memref<27x10x256xf32, #tpu.memory_space<vmem>>, vector<1x10x256xf32>
    %25 = vector.shape_cast %24 : vector<1x10x256xf32> to vector<10x256xf32>
    %26 = vector.extract_strided_slice %8 {offsets = [0, 16], sizes = [10, 256], strides = [1, 1]} : vector<10x384xf32> to vector<10x256xf32>
    %27 = arith.mulf %25, %26 : vector<10x256xf32>
    %28 = arith.addf %23, %27 : vector<10x256xf32>
    %c4 = arith.constant 4 : index
    %c0_18 = arith.constant 0 : index
    %c0_19 = arith.constant 0 : index
    %29 = vector.load %arg2[%c4, %c0_18, %c0_19] : memref<27x10x256xf32, #tpu.memory_space<vmem>>, vector<1x10x256xf32>
    %30 = vector.shape_cast %29 : vector<1x10x256xf32> to vector<10x256xf32>
    %31 = vector.extract_strided_slice %8 {offsets = [0, 17], sizes = [10, 256], strides = [1, 1]} : vector<10x384xf32> to vector<10x256xf32>
    %32 = arith.mulf %30, %31 : vector<10x256xf32>
    %33 = arith.addf %28, %32 : vector<10x256xf32>
    %c5 = arith.constant 5 : index
    %c0_20 = arith.constant 0 : index
    %c0_21 = arith.constant 0 : index
    %34 = vector.load %arg2[%c5, %c0_20, %c0_21] : memref<27x10x256xf32, #tpu.memory_space<vmem>>, vector<1x10x256xf32>
    %35 = vector.shape_cast %34 : vector<1x10x256xf32> to vector<10x256xf32>
    %36 = vector.extract_strided_slice %8 {offsets = [0, 18], sizes = [10, 256], strides = [1, 1]} : vector<10x384xf32> to vector<10x256xf32>
    %37 = arith.mulf %35, %36 : vector<10x256xf32>
    %38 = arith.addf %33, %37 : vector<10x256xf32>
    %c6 = arith.constant 6 : index
    %c0_22 = arith.constant 0 : index
    %c0_23 = arith.constant 0 : index
    %39 = vector.load %arg2[%c6, %c0_22, %c0_23] : memref<27x10x256xf32, #tpu.memory_space<vmem>>, vector<1x10x256xf32>
    %40 = vector.shape_cast %39 : vector<1x10x256xf32> to vector<10x256xf32>
    %41 = vector.extract_strided_slice %8 {offsets = [0, 32], sizes = [10, 256], strides = [1, 1]} : vector<10x384xf32> to vector<10x256xf32>
    %42 = arith.mulf %40, %41 : vector<10x256xf32>
    %43 = arith.addf %38, %42 : vector<10x256xf32>
    %c7 = arith.constant 7 : index
    %c0_24 = arith.constant 0 : index
    %c0_25 = arith.constant 0 : index
    %44 = vector.load %arg2[%c7, %c0_24, %c0_25] : memref<27x10x256xf32, #tpu.memory_space<vmem>>, vector<1x10x256xf32>
    %45 = vector.shape_cast %44 : vector<1x10x256xf32> to vector<10x256xf32>
    %46 = vector.extract_strided_slice %8 {offsets = [0, 33], sizes = [10, 256], strides = [1, 1]} : vector<10x384xf32> to vector<10x256xf32>
    %47 = arith.mulf %45, %46 : vector<10x256xf32>
    %48 = arith.addf %43, %47 : vector<10x256xf32>
    %c8 = arith.constant 8 : index
    %c0_26 = arith.constant 0 : index
    %c0_27 = arith.constant 0 : index
    %49 = vector.load %arg2[%c8, %c0_26, %c0_27] : memref<27x10x256xf32, #tpu.memory_space<vmem>>, vector<1x10x256xf32>
    %50 = vector.shape_cast %49 : vector<1x10x256xf32> to vector<10x256xf32>
    %51 = vector.extract_strided_slice %8 {offsets = [0, 34], sizes = [10, 256], strides = [1, 1]} : vector<10x384xf32> to vector<10x256xf32>
    %52 = arith.mulf %50, %51 : vector<10x256xf32>
    %53 = arith.addf %48, %52 : vector<10x256xf32>
    %c1_28 = arith.constant 1 : index
    %c0_29 = arith.constant 0 : index
    %54 = vector.load %arg5[%c1_28, %c0_29] : memref<3x384xf32, #tpu.memory_space<vmem>>, vector<1x384xf32>
    %55 = vector.shape_cast %54 : vector<1x384xf32> to vector<1x384xf32>
    %56 = vector.broadcast %55 : vector<1x384xf32> to vector<10x384xf32>
    %c9 = arith.constant 9 : index
    %c0_30 = arith.constant 0 : index
    %c0_31 = arith.constant 0 : index
    %57 = vector.load %arg2[%c9, %c0_30, %c0_31] : memref<27x10x256xf32, #tpu.memory_space<vmem>>, vector<1x10x256xf32>
    %58 = vector.shape_cast %57 : vector<1x10x256xf32> to vector<10x256xf32>
    %59 = vector.extract_strided_slice %56 {offsets = [0, 0], sizes = [10, 256], strides = [1, 1]} : vector<10x384xf32> to vector<10x256xf32>
    %60 = arith.mulf %58, %59 : vector<10x256xf32>
    %61 = arith.addf %53, %60 : vector<10x256xf32>
    %c10 = arith.constant 10 : index
    %c0_32 = arith.constant 0 : index
    %c0_33 = arith.constant 0 : index
    %62 = vector.load %arg2[%c10, %c0_32, %c0_33] : memref<27x10x256xf32, #tpu.memory_space<vmem>>, vector<1x10x256xf32>
    %63 = vector.shape_cast %62 : vector<1x10x256xf32> to vector<10x256xf32>
    %64 = vector.extract_strided_slice %56 {offsets = [0, 1], sizes = [10, 256], strides = [1, 1]} : vector<10x384xf32> to vector<10x256xf32>
    %65 = arith.mulf %63, %64 : vector<10x256xf32>
    %66 = arith.addf %61, %65 : vector<10x256xf32>
    %c11 = arith.constant 11 : index
    %c0_34 = arith.constant 0 : index
    %c0_35 = arith.constant 0 : index
    %67 = vector.load %arg2[%c11, %c0_34, %c0_35] : memref<27x10x256xf32, #tpu.memory_space<vmem>>, vector<1x10x256xf32>
    %68 = vector.shape_cast %67 : vector<1x10x256xf32> to vector<10x256xf32>
    %69 = vector.extract_strided_slice %56 {offsets = [0, 2], sizes = [10, 256], strides = [1, 1]} : vector<10x384xf32> to vector<10x256xf32>
    %70 = arith.mulf %68, %69 : vector<10x256xf32>
    %71 = arith.addf %66, %70 : vector<10x256xf32>
    %c12 = arith.constant 12 : index
    %c0_36 = arith.constant 0 : index
    %c0_37 = arith.constant 0 : index
    %72 = vector.load %arg2[%c12, %c0_36, %c0_37] : memref<27x10x256xf32, #tpu.memory_space<vmem>>, vector<1x10x256xf32>
    %73 = vector.shape_cast %72 : vector<1x10x256xf32> to vector<10x256xf32>
    %74 = vector.extract_strided_slice %56 {offsets = [0, 16], sizes = [10, 256], strides = [1, 1]} : vector<10x384xf32> to vector<10x256xf32>
    %75 = arith.mulf %73, %74 : vector<10x256xf32>
    %76 = arith.addf %71, %75 : vector<10x256xf32>
    %c13 = arith.constant 13 : index
    %c0_38 = arith.constant 0 : index
    %c0_39 = arith.constant 0 : index
    %77 = vector.load %arg2[%c13, %c0_38, %c0_39] : memref<27x10x256xf32, #tpu.memory_space<vmem>>, vector<1x10x256xf32>
    %78 = vector.shape_cast %77 : vector<1x10x256xf32> to vector<10x256xf32>
    %79 = vector.extract_strided_slice %56 {offsets = [0, 17], sizes = [10, 256], strides = [1, 1]} : vector<10x384xf32> to vector<10x256xf32>
    %80 = arith.mulf %78, %79 : vector<10x256xf32>
    %81 = arith.addf %76, %80 : vector<10x256xf32>
    %c14 = arith.constant 14 : index
    %c0_40 = arith.constant 0 : index
    %c0_41 = arith.constant 0 : index
    %82 = vector.load %arg2[%c14, %c0_40, %c0_41] : memref<27x10x256xf32, #tpu.memory_space<vmem>>, vector<1x10x256xf32>
    %83 = vector.shape_cast %82 : vector<1x10x256xf32> to vector<10x256xf32>
    %84 = vector.extract_strided_slice %56 {offsets = [0, 18], sizes = [10, 256], strides = [1, 1]} : vector<10x384xf32> to vector<10x256xf32>
    %85 = arith.mulf %83, %84 : vector<10x256xf32>
    %86 = arith.addf %81, %85 : vector<10x256xf32>
    %c15 = arith.constant 15 : index
    %c0_42 = arith.constant 0 : index
    %c0_43 = arith.constant 0 : index
    %87 = vector.load %arg2[%c15, %c0_42, %c0_43] : memref<27x10x256xf32, #tpu.memory_space<vmem>>, vector<1x10x256xf32>
    %88 = vector.shape_cast %87 : vector<1x10x256xf32> to vector<10x256xf32>
    %89 = vector.extract_strided_slice %56 {offsets = [0, 32], sizes = [10, 256], strides = [1, 1]} : vector<10x384xf32> to vector<10x256xf32>
    %90 = arith.mulf %88, %89 : vector<10x256xf32>
    %91 = arith.addf %86, %90 : vector<10x256xf32>
    %c16 = arith.constant 16 : index
    %c0_44 = arith.constant 0 : index
    %c0_45 = arith.constant 0 : index
    %92 = vector.load %arg2[%c16, %c0_44, %c0_45] : memref<27x10x256xf32, #tpu.memory_space<vmem>>, vector<1x10x256xf32>
    %93 = vector.shape_cast %92 : vector<1x10x256xf32> to vector<10x256xf32>
    %94 = vector.extract_strided_slice %56 {offsets = [0, 33], sizes = [10, 256], strides = [1, 1]} : vector<10x384xf32> to vector<10x256xf32>
    %95 = arith.mulf %93, %94 : vector<10x256xf32>
    %96 = arith.addf %91, %95 : vector<10x256xf32>
    %c17 = arith.constant 17 : index
    %c0_46 = arith.constant 0 : index
    %c0_47 = arith.constant 0 : index
    %97 = vector.load %arg2[%c17, %c0_46, %c0_47] : memref<27x10x256xf32, #tpu.memory_space<vmem>>, vector<1x10x256xf32>
    %98 = vector.shape_cast %97 : vector<1x10x256xf32> to vector<10x256xf32>
    %99 = vector.extract_strided_slice %56 {offsets = [0, 34], sizes = [10, 256], strides = [1, 1]} : vector<10x384xf32> to vector<10x256xf32>
    %100 = arith.mulf %98, %99 : vector<10x256xf32>
    %101 = arith.addf %96, %100 : vector<10x256xf32>
    %c2_48 = arith.constant 2 : index
    %c0_49 = arith.constant 0 : index
    %102 = vector.load %arg5[%c2_48, %c0_49] : memref<3x384xf32, #tpu.memory_space<vmem>>, vector<1x384xf32>
    %103 = vector.shape_cast %102 : vector<1x384xf32> to vector<1x384xf32>
    %104 = vector.broadcast %103 : vector<1x384xf32> to vector<10x384xf32>
    %c18 = arith.constant 18 : index
    %c0_50 = arith.constant 0 : index
    %c0_51 = arith.constant 0 : index
    %105 = vector.load %arg2[%c18, %c0_50, %c0_51] : memref<27x10x256xf32, #tpu.memory_space<vmem>>, vector<1x10x256xf32>
    %106 = vector.shape_cast %105 : vector<1x10x256xf32> to vector<10x256xf32>
    %107 = vector.extract_strided_slice %104 {offsets = [0, 0], sizes = [10, 256], strides = [1, 1]} : vector<10x384xf32> to vector<10x256xf32>
    %108 = arith.mulf %106, %107 : vector<10x256xf32>
    %109 = arith.addf %101, %108 : vector<10x256xf32>
    %c19 = arith.constant 19 : index
    %c0_52 = arith.constant 0 : index
    %c0_53 = arith.constant 0 : index
    %110 = vector.load %arg2[%c19, %c0_52, %c0_53] : memref<27x10x256xf32, #tpu.memory_space<vmem>>, vector<1x10x256xf32>
    %111 = vector.shape_cast %110 : vector<1x10x256xf32> to vector<10x256xf32>
    %112 = vector.extract_strided_slice %104 {offsets = [0, 1], sizes = [10, 256], strides = [1, 1]} : vector<10x384xf32> to vector<10x256xf32>
    %113 = arith.mulf %111, %112 : vector<10x256xf32>
    %114 = arith.addf %109, %113 : vector<10x256xf32>
    %c20 = arith.constant 20 : index
    %c0_54 = arith.constant 0 : index
    %c0_55 = arith.constant 0 : index
    %115 = vector.load %arg2[%c20, %c0_54, %c0_55] : memref<27x10x256xf32, #tpu.memory_space<vmem>>, vector<1x10x256xf32>
    %116 = vector.shape_cast %115 : vector<1x10x256xf32> to vector<10x256xf32>
    %117 = vector.extract_strided_slice %104 {offsets = [0, 2], sizes = [10, 256], strides = [1, 1]} : vector<10x384xf32> to vector<10x256xf32>
    %118 = arith.mulf %116, %117 : vector<10x256xf32>
    %119 = arith.addf %114, %118 : vector<10x256xf32>
    %c21 = arith.constant 21 : index
    %c0_56 = arith.constant 0 : index
    %c0_57 = arith.constant 0 : index
    %120 = vector.load %arg2[%c21, %c0_56, %c0_57] : memref<27x10x256xf32, #tpu.memory_space<vmem>>, vector<1x10x256xf32>
    %121 = vector.shape_cast %120 : vector<1x10x256xf32> to vector<10x256xf32>
    %122 = vector.extract_strided_slice %104 {offsets = [0, 16], sizes = [10, 256], strides = [1, 1]} : vector<10x384xf32> to vector<10x256xf32>
    %123 = arith.mulf %121, %122 : vector<10x256xf32>
    %124 = arith.addf %119, %123 : vector<10x256xf32>
    %c22 = arith.constant 22 : index
    %c0_58 = arith.constant 0 : index
    %c0_59 = arith.constant 0 : index
    %125 = vector.load %arg2[%c22, %c0_58, %c0_59] : memref<27x10x256xf32, #tpu.memory_space<vmem>>, vector<1x10x256xf32>
    %126 = vector.shape_cast %125 : vector<1x10x256xf32> to vector<10x256xf32>
    %127 = vector.extract_strided_slice %104 {offsets = [0, 17], sizes = [10, 256], strides = [1, 1]} : vector<10x384xf32> to vector<10x256xf32>
    %128 = arith.mulf %126, %127 : vector<10x256xf32>
    %129 = arith.addf %124, %128 : vector<10x256xf32>
    %c23 = arith.constant 23 : index
    %c0_60 = arith.constant 0 : index
    %c0_61 = arith.constant 0 : index
    %130 = vector.load %arg2[%c23, %c0_60, %c0_61] : memref<27x10x256xf32, #tpu.memory_space<vmem>>, vector<1x10x256xf32>
    %131 = vector.shape_cast %130 : vector<1x10x256xf32> to vector<10x256xf32>
    %132 = vector.extract_strided_slice %104 {offsets = [0, 18], sizes = [10, 256], strides = [1, 1]} : vector<10x384xf32> to vector<10x256xf32>
    %133 = arith.mulf %131, %132 : vector<10x256xf32>
    %134 = arith.addf %129, %133 : vector<10x256xf32>
    %c24 = arith.constant 24 : index
    %c0_62 = arith.constant 0 : index
    %c0_63 = arith.constant 0 : index
    %135 = vector.load %arg2[%c24, %c0_62, %c0_63] : memref<27x10x256xf32, #tpu.memory_space<vmem>>, vector<1x10x256xf32>
    %136 = vector.shape_cast %135 : vector<1x10x256xf32> to vector<10x256xf32>
    %137 = vector.extract_strided_slice %104 {offsets = [0, 32], sizes = [10, 256], strides = [1, 1]} : vector<10x384xf32> to vector<10x256xf32>
    %138 = arith.mulf %136, %137 : vector<10x256xf32>
    %139 = arith.addf %134, %138 : vector<10x256xf32>
    %c25 = arith.constant 25 : index
    %c0_64 = arith.constant 0 : index
    %c0_65 = arith.constant 0 : index
    %140 = vector.load %arg2[%c25, %c0_64, %c0_65] : memref<27x10x256xf32, #tpu.memory_space<vmem>>, vector<1x10x256xf32>
    %141 = vector.shape_cast %140 : vector<1x10x256xf32> to vector<10x256xf32>
    %142 = vector.extract_strided_slice %104 {offsets = [0, 33], sizes = [10, 256], strides = [1, 1]} : vector<10x384xf32> to vector<10x256xf32>
    %143 = arith.mulf %141, %142 : vector<10x256xf32>
    %144 = arith.addf %139, %143 : vector<10x256xf32>
    %c26 = arith.constant 26 : index
    %c0_66 = arith.constant 0 : index
    %c0_67 = arith.constant 0 : index
    %145 = vector.load %arg2[%c26, %c0_66, %c0_67] : memref<27x10x256xf32, #tpu.memory_space<vmem>>, vector<1x10x256xf32>
    %146 = vector.shape_cast %145 : vector<1x10x256xf32> to vector<10x256xf32>
    %147 = vector.extract_strided_slice %104 {offsets = [0, 34], sizes = [10, 256], strides = [1, 1]} : vector<10x384xf32> to vector<10x256xf32>
    %148 = arith.mulf %146, %147 : vector<10x256xf32>
    %149 = arith.addf %144, %148 : vector<10x256xf32>
    %c0_68 = arith.constant 0 : index
    %c0_69 = arith.constant 0 : index
    %c0_70 = arith.constant 0 : index
    %150 = vector.load %arg4[%c0_68, %c0_69, %c0_70] : memref<2x10x256xf32, #tpu.memory_space<vmem>>, vector<1x10x256xf32>
    %151 = vector.shape_cast %150 : vector<1x10x256xf32> to vector<10x256xf32>
    %152 = vector.shape_cast %149 : vector<10x256xf32> to vector<1x10x256xf32>
    tpu.vector_store %arg4[%c0_68, %c0_69, %c0_70], %152 {strides = array<i32>} : memref<2x10x256xf32, #tpu.memory_space<vmem>>, vector<1x10x256xf32>,
    %c1_71 = arith.constant 1 : index
    %c0_72 = arith.constant 0 : index
    %c0_73 = arith.constant 0 : index
    %153 = vector.load %arg1[%c1_71, %c0_72, %c0_73] : memref<2x3x256xf32, #tpu.memory_space<vmem>>, vector<1x3x256xf32>
    %154 = vector.shape_cast %153 : vector<1x3x256xf32> to vector<3x256xf32>
    %c0_74 = arith.constant 0 : index
    %c0_75 = arith.constant 0 : index
    %155 = vector.load %arg5[%c0_74, %c0_75] : memref<3x384xf32, #tpu.memory_space<vmem>>, vector<3x256xf32>
    tpu.vector_store %arg5[%c0_74, %c0_75], %154 {strides = array<i32>} : memref<3x384xf32, #tpu.memory_space<vmem>>, vector<3x256xf32>,
    %c0_76 = arith.constant 0 : index
    %c0_77 = arith.constant 0 : index
    %156 = vector.load %arg3[%c0_76, %c0_77] : memref<10x256xf32, #tpu.memory_space<vmem>>, vector<10x256xf32>
    %c0_78 = arith.constant 0 : index
    %c0_79 = arith.constant 0 : index
    %157 = vector.load %arg5[%c0_78, %c0_79] : memref<3x384xf32, #tpu.memory_space<vmem>>, vector<1x384xf32>
    %158 = vector.shape_cast %157 : vector<1x384xf32> to vector<1x384xf32>
    %159 = vector.broadcast %158 : vector<1x384xf32> to vector<10x384xf32>
    %c0_80 = arith.constant 0 : index
    %c0_81 = arith.constant 0 : index
    %c0_82 = arith.constant 0 : index
    %160 = vector.load %arg2[%c0_80, %c0_81, %c0_82] : memref<27x10x256xf32, #tpu.memory_space<vmem>>, vector<1x10x256xf32>
    %161 = vector.shape_cast %160 : vector<1x10x256xf32> to vector<10x256xf32>
    %162 = vector.extract_strided_slice %159 {offsets = [0, 0], sizes = [10, 256], strides = [1, 1]} : vector<10x384xf32> to vector<10x256xf32>
    %163 = arith.mulf %161, %162 : vector<10x256xf32>
    %164 = arith.addf %156, %163 : vector<10x256xf32>
    %c1_83 = arith.constant 1 : index
    %c0_84 = arith.constant 0 : index
    %c0_85 = arith.constant 0 : index
    %165 = vector.load %arg2[%c1_83, %c0_84, %c0_85] : memref<27x10x256xf32, #tpu.memory_space<vmem>>, vector<1x10x256xf32>
    %166 = vector.shape_cast %165 : vector<1x10x256xf32> to vector<10x256xf32>
    %167 = vector.extract_strided_slice %159 {offsets = [0, 1], sizes = [10, 256], strides = [1, 1]} : vector<10x384xf32> to vector<10x256xf32>
    %168 = arith.mulf %166, %167 : vector<10x256xf32>
    %169 = arith.addf %164, %168 : vector<10x256xf32>
    %c2_86 = arith.constant 2 : index
    %c0_87 = arith.constant 0 : index
    %c0_88 = arith.constant 0 : index
    %170 = vector.load %arg2[%c2_86, %c0_87, %c0_88] : memref<27x10x256xf32, #tpu.memory_space<vmem>>, vector<1x10x256xf32>
    %171 = vector.shape_cast %170 : vector<1x10x256xf32> to vector<10x256xf32>
    %172 = vector.extract_strided_slice %159 {offsets = [0, 2], sizes = [10, 256], strides = [1, 1]} : vector<10x384xf32> to vector<10x256xf32>
    %173 = arith.mulf %171, %172 : vector<10x256xf32>
    %174 = arith.addf %169, %173 : vector<10x256xf32>
    %c3_89 = arith.constant 3 : index
    %c0_90 = arith.constant 0 : index
    %c0_91 = arith.constant 0 : index
    %175 = vector.load %arg2[%c3_89, %c0_90, %c0_91] : memref<27x10x256xf32, #tpu.memory_space<vmem>>, vector<1x10x256xf32>
    %176 = vector.shape_cast %175 : vector<1x10x256xf32> to vector<10x256xf32>
    %177 = vector.extract_strided_slice %159 {offsets = [0, 16], sizes = [10, 256], strides = [1, 1]} : vector<10x384xf32> to vector<10x256xf32>
    %178 = arith.mulf %176, %177 : vector<10x256xf32>
    %179 = arith.addf %174, %178 : vector<10x256xf32>
    %c4_92 = arith.constant 4 : index
    %c0_93 = arith.constant 0 : index
    %c0_94 = arith.constant 0 : index
    %180 = vector.load %arg2[%c4_92, %c0_93, %c0_94] : memref<27x10x256xf32, #tpu.memory_space<vmem>>, vector<1x10x256xf32>
    %181 = vector.shape_cast %180 : vector<1x10x256xf32> to vector<10x256xf32>
    %182 = vector.extract_strided_slice %159 {offsets = [0, 17], sizes = [10, 256], strides = [1, 1]} : vector<10x384xf32> to vector<10x256xf32>
    %183 = arith.mulf %181, %182 : vector<10x256xf32>
    %184 = arith.addf %179, %183 : vector<10x256xf32>
    %c5_95 = arith.constant 5 : index
    %c0_96 = arith.constant 0 : index
    %c0_97 = arith.constant 0 : index
    %185 = vector.load %arg2[%c5_95, %c0_96, %c0_97] : memref<27x10x256xf32, #tpu.memory_space<vmem>>, vector<1x10x256xf32>
    %186 = vector.shape_cast %185 : vector<1x10x256xf32> to vector<10x256xf32>
    %187 = vector.extract_strided_slice %159 {offsets = [0, 18], sizes = [10, 256], strides = [1, 1]} : vector<10x384xf32> to vector<10x256xf32>
    %188 = arith.mulf %186, %187 : vector<10x256xf32>
    %189 = arith.addf %184, %188 : vector<10x256xf32>
    %c6_98 = arith.constant 6 : index
    %c0_99 = arith.constant 0 : index
    %c0_100 = arith.constant 0 : index
    %190 = vector.load %arg2[%c6_98, %c0_99, %c0_100] : memref<27x10x256xf32, #tpu.memory_space<vmem>>, vector<1x10x256xf32>
    %191 = vector.shape_cast %190 : vector<1x10x256xf32> to vector<10x256xf32>
    %192 = vector.extract_strided_slice %159 {offsets = [0, 32], sizes = [10, 256], strides = [1, 1]} : vector<10x384xf32> to vector<10x256xf32>
    %193 = arith.mulf %191, %192 : vector<10x256xf32>
    %194 = arith.addf %189, %193 : vector<10x256xf32>
    %c7_101 = arith.constant 7 : index
    %c0_102 = arith.constant 0 : index
    %c0_103 = arith.constant 0 : index
    %195 = vector.load %arg2[%c7_101, %c0_102, %c0_103] : memref<27x10x256xf32, #tpu.memory_space<vmem>>, vector<1x10x256xf32>
    %196 = vector.shape_cast %195 : vector<1x10x256xf32> to vector<10x256xf32>
    %197 = vector.extract_strided_slice %159 {offsets = [0, 33], sizes = [10, 256], strides = [1, 1]} : vector<10x384xf32> to vector<10x256xf32>
    %198 = arith.mulf %196, %197 : vector<10x256xf32>
    %199 = arith.addf %194, %198 : vector<10x256xf32>
    %c8_104 = arith.constant 8 : index
    %c0_105 = arith.constant 0 : index
    %c0_106 = arith.constant 0 : index
    %200 = vector.load %arg2[%c8_104, %c0_105, %c0_106] : memref<27x10x256xf32, #tpu.memory_space<vmem>>, vector<1x10x256xf32>
    %201 = vector.shape_cast %200 : vector<1x10x256xf32> to vector<10x256xf32>
    %202 = vector.extract_strided_slice %159 {offsets = [0, 34], sizes = [10, 256], strides = [1, 1]} : vector<10x384xf32> to vector<10x256xf32>
    %203 = arith.mulf %201, %202 : vector<10x256xf32>
    %204 = arith.addf %199, %203 : vector<10x256xf32>
    %c1_107 = arith.constant 1 : index
    %c0_108 = arith.constant 0 : index
    %205 = vector.load %arg5[%c1_107, %c0_108] : memref<3x384xf32, #tpu.memory_space<vmem>>, vector<1x384xf32>
    %206 = vector.shape_cast %205 : vector<1x384xf32> to vector<1x384xf32>
    %207 = vector.broadcast %206 : vector<1x384xf32> to vector<10x384xf32>
    %c9_109 = arith.constant 9 : index
    %c0_110 = arith.constant 0 : index
    %c0_111 = arith.constant 0 : index
    %208 = vector.load %arg2[%c9_109, %c0_110, %c0_111] : memref<27x10x256xf32, #tpu.memory_space<vmem>>, vector<1x10x256xf32>
    %209 = vector.shape_cast %208 : vector<1x10x256xf32> to vector<10x256xf32>
    %210 = vector.extract_strided_slice %207 {offsets = [0, 0], sizes = [10, 256], strides = [1, 1]} : vector<10x384xf32> to vector<10x256xf32>
    %211 = arith.mulf %209, %210 : vector<10x256xf32>
    %212 = arith.addf %204, %211 : vector<10x256xf32>
    %c10_112 = arith.constant 10 : index
    %c0_113 = arith.constant 0 : index
    %c0_114 = arith.constant 0 : index
    %213 = vector.load %arg2[%c10_112, %c0_113, %c0_114] : memref<27x10x256xf32, #tpu.memory_space<vmem>>, vector<1x10x256xf32>
    %214 = vector.shape_cast %213 : vector<1x10x256xf32> to vector<10x256xf32>
    %215 = vector.extract_strided_slice %207 {offsets = [0, 1], sizes = [10, 256], strides = [1, 1]} : vector<10x384xf32> to vector<10x256xf32>
    %216 = arith.mulf %214, %215 : vector<10x256xf32>
    %217 = arith.addf %212, %216 : vector<10x256xf32>
    %c11_115 = arith.constant 11 : index
    %c0_116 = arith.constant 0 : index
    %c0_117 = arith.constant 0 : index
    %218 = vector.load %arg2[%c11_115, %c0_116, %c0_117] : memref<27x10x256xf32, #tpu.memory_space<vmem>>, vector<1x10x256xf32>
    %219 = vector.shape_cast %218 : vector<1x10x256xf32> to vector<10x256xf32>
    %220 = vector.extract_strided_slice %207 {offsets = [0, 2], sizes = [10, 256], strides = [1, 1]} : vector<10x384xf32> to vector<10x256xf32>
    %221 = arith.mulf %219, %220 : vector<10x256xf32>
    %222 = arith.addf %217, %221 : vector<10x256xf32>
    %c12_118 = arith.constant 12 : index
    %c0_119 = arith.constant 0 : index
    %c0_120 = arith.constant 0 : index
    %223 = vector.load %arg2[%c12_118, %c0_119, %c0_120] : memref<27x10x256xf32, #tpu.memory_space<vmem>>, vector<1x10x256xf32>
    %224 = vector.shape_cast %223 : vector<1x10x256xf32> to vector<10x256xf32>
    %225 = vector.extract_strided_slice %207 {offsets = [0, 16], sizes = [10, 256], strides = [1, 1]} : vector<10x384xf32> to vector<10x256xf32>
    %226 = arith.mulf %224, %225 : vector<10x256xf32>
    %227 = arith.addf %222, %226 : vector<10x256xf32>
    %c13_121 = arith.constant 13 : index
    %c0_122 = arith.constant 0 : index
    %c0_123 = arith.constant 0 : index
    %228 = vector.load %arg2[%c13_121, %c0_122, %c0_123] : memref<27x10x256xf32, #tpu.memory_space<vmem>>, vector<1x10x256xf32>
    %229 = vector.shape_cast %228 : vector<1x10x256xf32> to vector<10x256xf32>
    %230 = vector.extract_strided_slice %207 {offsets = [0, 17], sizes = [10, 256], strides = [1, 1]} : vector<10x384xf32> to vector<10x256xf32>
    %231 = arith.mulf %229, %230 : vector<10x256xf32>
    %232 = arith.addf %227, %231 : vector<10x256xf32>
    %c14_124 = arith.constant 14 : index
    %c0_125 = arith.constant 0 : index
    %c0_126 = arith.constant 0 : index
    %233 = vector.load %arg2[%c14_124, %c0_125, %c0_126] : memref<27x10x256xf32, #tpu.memory_space<vmem>>, vector<1x10x256xf32>
    %234 = vector.shape_cast %233 : vector<1x10x256xf32> to vector<10x256xf32>
    %235 = vector.extract_strided_slice %207 {offsets = [0, 18], sizes = [10, 256], strides = [1, 1]} : vector<10x384xf32> to vector<10x256xf32>
    %236 = arith.mulf %234, %235 : vector<10x256xf32>
    %237 = arith.addf %232, %236 : vector<10x256xf32>
    %c15_127 = arith.constant 15 : index
    %c0_128 = arith.constant 0 : index
    %c0_129 = arith.constant 0 : index
    %238 = vector.load %arg2[%c15_127, %c0_128, %c0_129] : memref<27x10x256xf32, #tpu.memory_space<vmem>>, vector<1x10x256xf32>
    %239 = vector.shape_cast %238 : vector<1x10x256xf32> to vector<10x256xf32>
    %240 = vector.extract_strided_slice %207 {offsets = [0, 32], sizes = [10, 256], strides = [1, 1]} : vector<10x384xf32> to vector<10x256xf32>
    %241 = arith.mulf %239, %240 : vector<10x256xf32>
    %242 = arith.addf %237, %241 : vector<10x256xf32>
    %c16_130 = arith.constant 16 : index
    %c0_131 = arith.constant 0 : index
    %c0_132 = arith.constant 0 : index
    %243 = vector.load %arg2[%c16_130, %c0_131, %c0_132] : memref<27x10x256xf32, #tpu.memory_space<vmem>>, vector<1x10x256xf32>
    %244 = vector.shape_cast %243 : vector<1x10x256xf32> to vector<10x256xf32>
    %245 = vector.extract_strided_slice %207 {offsets = [0, 33], sizes = [10, 256], strides = [1, 1]} : vector<10x384xf32> to vector<10x256xf32>
    %246 = arith.mulf %244, %245 : vector<10x256xf32>
    %247 = arith.addf %242, %246 : vector<10x256xf32>
    %c17_133 = arith.constant 17 : index
    %c0_134 = arith.constant 0 : index
    %c0_135 = arith.constant 0 : index
    %248 = vector.load %arg2[%c17_133, %c0_134, %c0_135] : memref<27x10x256xf32, #tpu.memory_space<vmem>>, vector<1x10x256xf32>
    %249 = vector.shape_cast %248 : vector<1x10x256xf32> to vector<10x256xf32>
    %250 = vector.extract_strided_slice %207 {offsets = [0, 34], sizes = [10, 256], strides = [1, 1]} : vector<10x384xf32> to vector<10x256xf32>
    %251 = arith.mulf %249, %250 : vector<10x256xf32>
    %252 = arith.addf %247, %251 : vector<10x256xf32>
    %c2_136 = arith.constant 2 : index
    %c0_137 = arith.constant 0 : index
    %253 = vector.load %arg5[%c2_136, %c0_137] : memref<3x384xf32, #tpu.memory_space<vmem>>, vector<1x384xf32>
    %254 = vector.shape_cast %253 : vector<1x384xf32> to vector<1x384xf32>
    %255 = vector.broadcast %254 : vector<1x384xf32> to vector<10x384xf32>
    %c18_138 = arith.constant 18 : index
    %c0_139 = arith.constant 0 : index
    %c0_140 = arith.constant 0 : index
    %256 = vector.load %arg2[%c18_138, %c0_139, %c0_140] : memref<27x10x256xf32, #tpu.memory_space<vmem>>, vector<1x10x256xf32>
    %257 = vector.shape_cast %256 : vector<1x10x256xf32> to vector<10x256xf32>
    %258 = vector.extract_strided_slice %255 {offsets = [0, 0], sizes = [10, 256], strides = [1, 1]} : vector<10x384xf32> to vector<10x256xf32>
    %259 = arith.mulf %257, %258 : vector<10x256xf32>
    %260 = arith.addf %252, %259 : vector<10x256xf32>
    %c19_141 = arith.constant 19 : index
    %c0_142 = arith.constant 0 : index
    %c0_143 = arith.constant 0 : index
    %261 = vector.load %arg2[%c19_141, %c0_142, %c0_143] : memref<27x10x256xf32, #tpu.memory_space<vmem>>, vector<1x10x256xf32>
    %262 = vector.shape_cast %261 : vector<1x10x256xf32> to vector<10x256xf32>
    %263 = vector.extract_strided_slice %255 {offsets = [0, 1], sizes = [10, 256], strides = [1, 1]} : vector<10x384xf32> to vector<10x256xf32>
    %264 = arith.mulf %262, %263 : vector<10x256xf32>
    %265 = arith.addf %260, %264 : vector<10x256xf32>
    %c20_144 = arith.constant 20 : index
    %c0_145 = arith.constant 0 : index
    %c0_146 = arith.constant 0 : index
    %266 = vector.load %arg2[%c20_144, %c0_145, %c0_146] : memref<27x10x256xf32, #tpu.memory_space<vmem>>, vector<1x10x256xf32>
    %267 = vector.shape_cast %266 : vector<1x10x256xf32> to vector<10x256xf32>
    %268 = vector.extract_strided_slice %255 {offsets = [0, 2], sizes = [10, 256], strides = [1, 1]} : vector<10x384xf32> to vector<10x256xf32>
    %269 = arith.mulf %267, %268 : vector<10x256xf32>
    %270 = arith.addf %265, %269 : vector<10x256xf32>
    %c21_147 = arith.constant 21 : index
    %c0_148 = arith.constant 0 : index
    %c0_149 = arith.constant 0 : index
    %271 = vector.load %arg2[%c21_147, %c0_148, %c0_149] : memref<27x10x256xf32, #tpu.memory_space<vmem>>, vector<1x10x256xf32>
    %272 = vector.shape_cast %271 : vector<1x10x256xf32> to vector<10x256xf32>
    %273 = vector.extract_strided_slice %255 {offsets = [0, 16], sizes = [10, 256], strides = [1, 1]} : vector<10x384xf32> to vector<10x256xf32>
    %274 = arith.mulf %272, %273 : vector<10x256xf32>
    %275 = arith.addf %270, %274 : vector<10x256xf32>
    %c22_150 = arith.constant 22 : index
    %c0_151 = arith.constant 0 : index
    %c0_152 = arith.constant 0 : index
    %276 = vector.load %arg2[%c22_150, %c0_151, %c0_152] : memref<27x10x256xf32, #tpu.memory_space<vmem>>, vector<1x10x256xf32>
    %277 = vector.shape_cast %276 : vector<1x10x256xf32> to vector<10x256xf32>
    %278 = vector.extract_strided_slice %255 {offsets = [0, 17], sizes = [10, 256], strides = [1, 1]} : vector<10x384xf32> to vector<10x256xf32>
    %279 = arith.mulf %277, %278 : vector<10x256xf32>
    %280 = arith.addf %275, %279 : vector<10x256xf32>
    %c23_153 = arith.constant 23 : index
    %c0_154 = arith.constant 0 : index
    %c0_155 = arith.constant 0 : index
    %281 = vector.load %arg2[%c23_153, %c0_154, %c0_155] : memref<27x10x256xf32, #tpu.memory_space<vmem>>, vector<1x10x256xf32>
    %282 = vector.shape_cast %281 : vector<1x10x256xf32> to vector<10x256xf32>
    %283 = vector.extract_strided_slice %255 {offsets = [0, 18], sizes = [10, 256], strides = [1, 1]} : vector<10x384xf32> to vector<10x256xf32>
    %284 = arith.mulf %282, %283 : vector<10x256xf32>
    %285 = arith.addf %280, %284 : vector<10x256xf32>
    %c24_156 = arith.constant 24 : index
    %c0_157 = arith.constant 0 : index
    %c0_158 = arith.constant 0 : index
    %286 = vector.load %arg2[%c24_156, %c0_157, %c0_158] : memref<27x10x256xf32, #tpu.memory_space<vmem>>, vector<1x10x256xf32>
    %287 = vector.shape_cast %286 : vector<1x10x256xf32> to vector<10x256xf32>
    %288 = vector.extract_strided_slice %255 {offsets = [0, 32], sizes = [10, 256], strides = [1, 1]} : vector<10x384xf32> to vector<10x256xf32>
    %289 = arith.mulf %287, %288 : vector<10x256xf32>
    %290 = arith.addf %285, %289 : vector<10x256xf32>
    %c25_159 = arith.constant 25 : index
    %c0_160 = arith.constant 0 : index
    %c0_161 = arith.constant 0 : index
    %291 = vector.load %arg2[%c25_159, %c0_160, %c0_161] : memref<27x10x256xf32, #tpu.memory_space<vmem>>, vector<1x10x256xf32>
    %292 = vector.shape_cast %291 : vector<1x10x256xf32> to vector<10x256xf32>
    %293 = vector.extract_strided_slice %255 {offsets = [0, 33], sizes = [10, 256], strides = [1, 1]} : vector<10x384xf32> to vector<10x256xf32>
    %294 = arith.mulf %292, %293 : vector<10x256xf32>
    %295 = arith.addf %290, %294 : vector<10x256xf32>
    %c26_162 = arith.constant 26 : index
    %c0_163 = arith.constant 0 : index
    %c0_164 = arith.constant 0 : index
    %296 = vector.load %arg2[%c26_162, %c0_163, %c0_164] : memref<27x10x256xf32, #tpu.memory_space<vmem>>, vector<1x10x256xf32>
    %297 = vector.shape_cast %296 : vector<1x10x256xf32> to vector<10x256xf32>
    %298 = vector.extract_strided_slice %255 {offsets = [0, 34], sizes = [10, 256], strides = [1, 1]} : vector<10x384xf32> to vector<10x256xf32>
    %299 = arith.mulf %297, %298 : vector<10x256xf32>
    %300 = arith.addf %295, %299 : vector<10x256xf32>
    %c1_165 = arith.constant 1 : index
    %c0_166 = arith.constant 0 : index
    %c0_167 = arith.constant 0 : index
    %301 = vector.load %arg4[%c1_165, %c0_166, %c0_167] : memref<2x10x256xf32, #tpu.memory_space<vmem>>, vector<1x10x256xf32>
    %302 = vector.shape_cast %301 : vector<1x10x256xf32> to vector<10x256xf32>
    %303 = vector.shape_cast %300 : vector<10x256xf32> to vector<1x10x256xf32>
    tpu.vector_store %arg4[%c1_165, %c0_166, %c0_167], %303 {strides = array<i32>} : memref<2x10x256xf32, #tpu.memory_space<vmem>>, vector<1x10x256xf32>,
    return
  }
  func.func @transform_0(%arg0: i32) -> (i32, i32, i32) {
    %c0_i32 = arith.constant 0 : i32
    %c0_i32_0 = arith.constant 0 : i32
    %c0_i32_1 = arith.constant 0 : i32
    return %arg0, %c0_i32, %c0_i32_0 : i32, i32, i32
  }
  func.func @transform_1(%arg0: i32) -> (i32, i32, i32) {
    %c0_i32 = arith.constant 0 : i32
    %c0_i32_0 = arith.constant 0 : i32
    %c0_i32_1 = arith.constant 0 : i32
    %c0_i32_2 = arith.constant 0 : i32
    return %c0_i32, %c0_i32_0, %c0_i32_1 : i32, i32, i32
  }
  func.func @transform_2(%arg0: i32) -> (i32, i32) {
    %c0_i32 = arith.constant 0 : i32
    %c0_i32_0 = arith.constant 0 : i32
    %c0_i32_1 = arith.constant 0 : i32
    return %c0_i32, %c0_i32_0 : i32, i32
  }
  func.func @transform_3(%arg0: i32) -> (i32, i32, i32) {
    %c0_i32 = arith.constant 0 : i32
    %c0_i32_0 = arith.constant 0 : i32
    %c0_i32_1 = arith.constant 0 : i32
    return %arg0, %c0_i32, %c0_i32_0 : i32, i32, i32
  }
}

</mosaic_0001>

<llo_original>
// kernel: tpu_custom_call.1
$region0: #{tpu_custom_call.1}
  #allocation0 [shape = 'u32[]', space=smem, size = 0x4, offset = 0x4, fixed_abs, tag = 'smem constant byte address 0x4 - core index']
  #allocation1 [shape = 'u32[72,128]{1,0:T(1,128)}', space=vmem, size = 0x9000, scoped, tag = 'internal scratch']
  #allocation2 [shape = 'f32[3,384]{1,0:T(4,128)}', space=vmem, size = 0x1800, scoped, tag = 'scratch operand']
  %s0 = inlined_call_operand.vmem [shape: f32[4,3,256], index: 0, kind: input, shape index: {}]
  %s1 = inlined_call_operand.vmem [shape: f32[27,10,256], index: 1, kind: input, shape index: {}]
  %s2 = inlined_call_operand.vmem [shape: f32[10,256], index: 2, kind: input, shape index: {}]
  %s3 = inlined_call_operand.vmem [shape: f32[4,10,256], index: 3, kind: output, shape index: {}]
  %s4 = sld [smem:[#allocation0]]
  $region45: #{tpu_custom_call.1} parent=0
    _
  %s6 = ssub.s32 1, %s4
  %s7 = scalar_select 0, %s6, %s4
  loop: start=0, step=1, limit=4
  $region2: #{tpu_custom_call.1} parent=0 // loop_pre_header
    _
  $region3: #{tpu_custom_call.1} parent=0 // loop_header
    %s9 = sphi 0, %s13
    %p10 = scmp.ge.s32.totalorder %s9, 4
    %s19 = sphi 0, %s21
    %s22 = sphi 0, %s19
    %s23 = sphi 0, %s22
    %s39 = sphi 0, %s23
    %s43 = sphi 0, %s43
    %s45 = sphi 0, %s43
    %s46 = sphi 0, %s45
    %s60 = sphi 0, %s46
    %s64 = sphi 0, %s64
    %s66 = sphi 0, %s64
    %s67 = sphi 0, %s66
    %s81 = sphi 0, %s67
    %s87 = sphi 0, %s89
    %s90 = sphi 0, %s87
    %s91 = sphi 0, %s90
    %s107 = sphi 0, %s91
  $region4: #{tpu_custom_call.1} parent=0 // loop_header_branch
    %12 = sbr.rel (%p10) target = $region8
  $region5: #{tpu_custom_call.1} parent=0 // loop_body
    %s14 = ssub.s32 %s9, 1
    %s15 = ssub.s32 %s9, 2
    %s16 = sadd.s32 %s9, 1
    %s17 = ssub.s32 %s9, %s16
    %p18 = scmp.eq.s32.totalorder %s17, 0
    %s20 = sadd.s32 %s19, 1
    %s21 = scalar_select %p18, %s19, %s20
    %p24 = pneg %p18
    %p25 = scmp.eq.s32.totalorder %s9, 1
    %p26 = por %p24, %p25
    %p27 = scmp.ne.s32.totalorder %s19, %s22
    %p28 = scmp.eq.s32.totalorder %s9, 0
    %p29 = por %p27, %p28
    %p30 = scmp.ne.s32.totalorder %s19, %s22
    %p31 = scmp.eq.s32.totalorder %s14, 1
    %p32 = por %p30, %p31
    %p33 = scmp.ne.s32.totalorder %s22, %s23
    %p34 = scmp.eq.s32.totalorder %s14, 0
    %p35 = por %p33, %p34
    %p36 = scmp.ne.s32.totalorder %s22, %s23
    %p37 = scmp.eq.s32.totalorder %s15, 1
    %p38 = por %p36, %p37
    %p40 = scmp.ne.s32.totalorder %s23, %s39
    %p41 = scmp.eq.s32.totalorder %s15, 0
    %p42 = por %p40, %p41
    %s44 = sadd.s32 %s43, 1
    %p47 = scmp.eq.s32.totalorder %s9, 1
    %p48 = scmp.ne.s32.totalorder %s43, %s45
    %p49 = scmp.eq.s32.totalorder %s9, 0
    %p50 = por %p48, %p49
    %p51 = scmp.ne.s32.totalorder %s43, %s45
    %p52 = scmp.eq.s32.totalorder %s14, 1
    %p53 = por %p51, %p52
    %p54 = scmp.ne.s32.totalorder %s45, %s46
    %p55 = scmp.eq.s32.totalorder %s14, 0
    %p56 = por %p54, %p55
    %p57 = scmp.ne.s32.totalorder %s45, %s46
    %p58 = scmp.eq.s32.totalorder %s15, 1
    %p59 = por %p57, %p58
    %p61 = scmp.ne.s32.totalorder %s46, %s60
    %p62 = scmp.eq.s32.totalorder %s15, 0
    %p63 = por %p61, %p62
    %s65 = sadd.s32 %s64, 1
    %p68 = scmp.eq.s32.totalorder %s9, 1
    %p69 = scmp.ne.s32.totalorder %s64, %s66
    %p70 = scmp.eq.s32.totalorder %s9, 0
    %p71 = por %p69, %p70
    %p72 = scmp.ne.s32.totalorder %s64, %s66
    %p73 = scmp.eq.s32.totalorder %s14, 1
    %p74 = por %p72, %p73
    %p75 = scmp.ne.s32.totalorder %s66, %s67
    %p76 = scmp.eq.s32.totalorder %s14, 0
    %p77 = por %p75, %p76
    %p78 = scmp.ne.s32.totalorder %s66, %s67
    %p79 = scmp.eq.s32.totalorder %s15, 1
    %p80 = por %p78, %p79
    %p82 = scmp.ne.s32.totalorder %s67, %s81
    %p83 = scmp.eq.s32.totalorder %s15, 0
    %p84 = por %p82, %p83
    %s85 = ssub.s32 %s9, %s16
    %p86 = scmp.eq.s32.totalorder %s85, 0
    %s88 = sadd.s32 %s87, 1
    %s89 = scalar_select %p86, %s87, %s88
    %p92 = pneg %p86
    %p93 = scmp.eq.s32.totalorder %s9, 1
    %p94 = por %p92, %p93
    %p95 = scmp.ne.s32.totalorder %s87, %s90
    %p96 = scmp.eq.s32.totalorder %s9, 0
    %p97 = por %p95, %p96
    %p98 = scmp.ne.s32.totalorder %s87, %s90
    %p99 = scmp.eq.s32.totalorder %s14, 1
    %p100 = por %p98, %p99
    %p101 = scmp.ne.s32.totalorder %s90, %s91
    %p102 = scmp.eq.s32.totalorder %s14, 0
    %p103 = por %p101, %p102
    %p104 = scmp.ne.s32.totalorder %s90, %s91
    %p105 = scmp.eq.s32.totalorder %s15, 1
    %p106 = por %p104, %p105
    %p108 = scmp.ne.s32.totalorder %s91, %s107
    %p109 = scmp.eq.s32.totalorder %s15, 0
    %p110 = por %p108, %p109
    %p111 = scmp.le.s32.totalorder 1, %s9
    %p112 = scmp.lt.s32.totalorder %s9, 3
    %p113 = pnand %p111, %p112
    %p114 = pneg %p113
    // Predicated region
    $region9: #{tpu_custom_call.1} parent=5 // pred_check
      _
    $region10: #{tpu_custom_call.1} parent=5 // pred_check_branch
      %116 = sbr.rel (%p113) target = $region12
    $region11: #{tpu_custom_call.1} parent=5 // pred_region
      %s117 = ssub.s32 %s9, 1
      // Predicated region
      $region13: #{tpu_custom_call.1} parent=11 // pred_check
        %p118 = pneg %p56
      $region14: #{tpu_custom_call.1} parent=11 // pred_check_branch
        %120 = sbr.rel (%p118) target = $region16
      $region15: #{tpu_custom_call.1} parent=11 // pred_region
        _
      $region16: #{tpu_custom_call.1} parent=11 // pred_fallthru
        _
      // Predicated region
      $region17: #{tpu_custom_call.1} parent=11 // pred_check
        %p121 = pneg %p77
      $region18: #{tpu_custom_call.1} parent=11 // pred_check_branch
        %123 = sbr.rel (%p121) target = $region20
      $region19: #{tpu_custom_call.1} parent=11 // pred_region
        _
      $region20: #{tpu_custom_call.1} parent=11 // pred_fallthru
        _
    $region12: #{tpu_custom_call.1} parent=5 // pred_fallthru
      _
    %p124 = scmp.lt.s32.totalorder %s9, 2
    // Predicated region
    $region21: #{tpu_custom_call.1} parent=5 // pred_check
      %p125 = pneg %p124
    $region22: #{tpu_custom_call.1} parent=5 // pred_check_branch
      %127 = sbr.rel (%p125) target = $region24
    $region23: #{tpu_custom_call.1} parent=5 // pred_region
      // Predicated region
      $region25: #{tpu_custom_call.1} parent=23 // pred_check
        %p128 = pneg %p29
      $region26: #{tpu_custom_call.1} parent=23 // pred_check_branch
        %130 = sbr.rel (%p128) target = $region28
      $region27: #{tpu_custom_call.1} parent=23 // pred_region
        %s131 = smul.u32 2, %s9
        %p132 = scmp.lt.s32.totalorder %s131, 3
        %s133 = scalar_select %p132, %s131, 3
        %s134 = smul.addr %s133, 2
        %s135 = smul.addr %s134, 4
        %s136 = scalar_lea.vmem %s0, %s135
        %s137 = smul.u32 2, %s9
      $region28: #{tpu_custom_call.1} parent=23 // pred_fallthru
        _
    $region24: #{tpu_custom_call.1} parent=5 // pred_fallthru
      _
    %p138 = scmp.le.s32.totalorder 1, %s9
    %p139 = scmp.lt.s32.totalorder %s9, 3
    %p140 = pnand %p138, %p139
    %p141 = pneg %p140
    // Predicated region
    $region29: #{tpu_custom_call.1} parent=5 // pred_check
      _
    $region30: #{tpu_custom_call.1} parent=5 // pred_check_branch
      %143 = sbr.rel (%p140) target = $region32
    $region31: #{tpu_custom_call.1} parent=5 // pred_region
      %s144 = ssub.s32 %s9, 1
      %s145 = smul.u32 2, %s14
      %p146 = scmp.lt.s32.totalorder %s145, 3
      %s147 = scalar_select %p146, %s145, 3
      %s148 = smul.addr %s147, 2
      %s149 = smul.addr %s148, 4
      %s150 = scalar_lea.vmem %s0, %s149
      %p151 = pneg %p35
      %p152 = pneg %p32
      %p153 = pneg %p56
      %p154 = pneg %p53
      %p155 = pneg %p77
      %p156 = pneg %p74
      %p157 = pneg %p103
      %p158 = pneg %p100
      %s159 = smul.u32 2, %s14
      %p160 = scmp.lt.s32.totalorder %s159, 3
      %s161 = scalar_select %p160, %s159, 3
      %s162 = smul.addr %s161, 4
      %s163 = smul.addr %s162, 8
      %s164 = scalar_lea.vmem %s3, %s163
      %s165 = smul.u32 2, %s14
      %p166 = scmp.lt.s32.totalorder %s165, 3
      %s167 = scalar_select %p166, %s165, 3
      %s168 = smul.addr %s167, 2
      %s169 = smul.addr %s168, 4
      %s170 = scalar_lea.vmem %s0, %s169
      %s171 = smul.u32 2, %s14
      %s172 = smul.u32 2, %s14
      %p173 = scmp.lt.s32.totalorder %s172, 3
      %s174 = scalar_select %p173, %s172, 3
      %s175 = smul.addr %s174, 4
      %s176 = smul.addr %s175, 8
      %s177 = scalar_lea.vmem %s3, %s176
      %s178 = smul.u32 2, %s14
      %179 = vst [vmem:[#allocation2 + $0x8] sm:$0x7] 0.0
      %v180 = vld [vmem:[%s170] sm:$0x77]
      %181 = vst [vmem:[#allocation2] sm:$0x77] %v180
      %v182 = vld [vmem:[%s2] sm:$0xff]
      %v183 = vld [vmem:[%s2 + $0x8] sm:$0xff]
      %v184 = vld [vmem:[%s2 + $0x10] sm:$0x3]
      %v185 = vld [vmem:[%s2 + $0x18] sm:$0x3]
      %v186 = vld [vmem:[#allocation2] ss:$4 sm:$0x7]
      %v187 = vld [vmem:[%s1] sm:$0xff]
      %v188 = vld [vmem:[%s1 + $0x8] sm:$0xff]
      %v189 = vld [vmem:[%s1 + $0x10] sm:$0x3]
      %v190 = vld [vmem:[%s1 + $0x18] sm:$0x3]
      %v192 = vperm.slane %v186, 0
      %v193 = vperm.slane %v186, 1
      %v196 = vmul.f32 %v187, %v192
      %v197 = vmul.f32 %v188, %v193
      %v198 = vmul.f32 %v189, %v192
      %v199 = vmul.f32 %v190, %v193
      %v200 = vadd.f32 %v182, %v196
      %v201 = vadd.f32 %v183, %v197
      %v202 = vadd.f32 %v184, %v198
      %v203 = vadd.f32 %v185, %v199
      %s204 = scalar_lea.vmem %s1, 32
      %v205 = vld [vmem:[%s204] sm:$0xff]
      %v206 = vld [vmem:[%s204 + $0x8] sm:$0xff]
      %v207 = vld [vmem:[%s204 + $0x10] sm:$0x3]
      %v208 = vld [vmem:[%s204 + $0x18] sm:$0x3]
      %v209 = vperm.slane %v186, 2
      %210 = vrot.lane.b32.xlu0 %v192, 127
      %v211 = vpop.permute.xlu0 %210
      %212 = vrot.lane.b32.xlu0 %v193, 127
      %v213 = vpop.permute.xlu0 %212
      %214 = vrot.lane.b32.xlu0 %v209, 127
      %v215 = vpop.permute.xlu0 %214
      %vm216 = vcmask 1039360
      %v217 = vsel %vm216, %v211, %v213
      %v218 = vsel %vm216, %v213, %v215
      %v221 = vmul.f32 %v205, %v217
      %v222 = vmul.f32 %v206, %v218
      %v223 = vmul.f32 %v207, %v217
      %v224 = vmul.f32 %v208, %v218
      %v225 = vadd.f32 %v200, %v221
      %v226 = vadd.f32 %v201, %v222
      %v227 = vadd.f32 %v202, %v223
      %v228 = vadd.f32 %v203, %v224
      %s229 = scalar_lea.vmem %s1, 64
      %v230 = vld [vmem:[%s229] sm:$0xff]
      %v231 = vld [vmem:[%s229 + $0x8] sm:$0xff]
      %v232 = vld [vmem:[%s229 + $0x10] sm:$0x3]
      %v233 = vld [vmem:[%s229 + $0x18] sm:$0x3]
      %234 = vrot.lane.b32.xlu0 %v192, 126
      %v235 = vpop.permute.xlu0 %234
      %236 = vrot.lane.b32.xlu0 %v193, 126
      %v237 = vpop.permute.xlu0 %236
      %238 = vrot.lane.b32.xlu0 %v209, 126
      %v239 = vpop.permute.xlu0 %238
      %vm240 = vcmask 1031168
      %v241 = vsel %vm240, %v235, %v237
      %v242 = vsel %vm240, %v237, %v239
      %v245 = vmul.f32 %v230, %v241
      %v246 = vmul.f32 %v231, %v242
      %v247 = vmul.f32 %v232, %v241
      %v248 = vmul.f32 %v233, %v242
      %v249 = vadd.f32 %v225, %v245
      %v250 = vadd.f32 %v226, %v246
      %v251 = vadd.f32 %v227, %v247
      %v252 = vadd.f32 %v228, %v248
      %s253 = scalar_lea.vmem %s1, 96
      %v254 = vld [vmem:[%s253] sm:$0xff]
      %v255 = vld [vmem:[%s253 + $0x8] sm:$0xff]
      %v256 = vld [vmem:[%s253 + $0x10] sm:$0x3]
      %v257 = vld [vmem:[%s253 + $0x18] sm:$0x3]
      %258 = vrot.lane.b32.xlu0 %v192, 112
      %v259 = vpop.permute.xlu0 %258
      %260 = vrot.lane.b32.xlu0 %v193, 112
      %v261 = vpop.permute.xlu0 %260
      %262 = vrot.lane.b32.xlu0 %v209, 112
      %v263 = vpop.permute.xlu0 %262
      %vm264 = vcmask 916480
      %v265 = vsel %vm264, %v259, %v261
      %v266 = vsel %vm264, %v261, %v263
      %v269 = vmul.f32 %v254, %v265
      %v270 = vmul.f32 %v255, %v266
      %v271 = vmul.f32 %v256, %v265
      %v272 = vmul.f32 %v257, %v266
      %v273 = vadd.f32 %v249, %v269
      %v274 = vadd.f32 %v250, %v270
      %v275 = vadd.f32 %v251, %v271
      %v276 = vadd.f32 %v252, %v272
      %s277 = scalar_lea.vmem %s1, 128
      %v278 = vld [vmem:[%s277] sm:$0xff]
      %v279 = vld [vmem:[%s277 + $0x8] sm:$0xff]
      %v280 = vld [vmem:[%s277 + $0x10] sm:$0x3]
      %v281 = vld [vmem:[%s277 + $0x18] sm:$0x3]
      %282 = vrot.lane.b32.xlu0 %v192, 111
      %v283 = vpop.permute.xlu0 %282
      %284 = vrot.lane.b32.xlu0 %v193, 111
      %v285 = vpop.permute.xlu0 %284
      %286 = vrot.lane.b32.xlu0 %v209, 111
      %v287 = vpop.permute.xlu0 %286
      %vm288 = vcmask 908288
      %v289 = vsel %vm288, %v283, %v285
      %v290 = vsel %vm288, %v285, %v287
      %v293 = vmul.f32 %v278, %v289
      %v294 = vmul.f32 %v279, %v290
      %v295 = vmul.f32 %v280, %v289
      %v296 = vmul.f32 %v281, %v290
      %v297 = vadd.f32 %v273, %v293
      %v298 = vadd.f32 %v274, %v294
      %v299 = vadd.f32 %v275, %v295
      %v300 = vadd.f32 %v276, %v296
      %s301 = scalar_lea.vmem %s1, 160
      %v302 = vld [vmem:[%s301] sm:$0xff]
      %v303 = vld [vmem:[%s301 + $0x8] sm:$0xff]
      %v304 = vld [vmem:[%s301 + $0x10] sm:$0x3]
      %v305 = vld [vmem:[%s301 + $0x18] sm:$0x3]
      %306 = vrot.lane.b32.xlu0 %v192, 110
      %v307 = vpop.permute.xlu0 %306
      %308 = vrot.lane.b32.xlu0 %v193, 110
      %v309 = vpop.permute.xlu0 %308
      %310 = vrot.lane.b32.xlu0 %v209, 110
      %v311 = vpop.permute.xlu0 %310
      %vm312 = vcmask 900096
      %v313 = vsel %vm312, %v307, %v309
      %v314 = vsel %vm312, %v309, %v311
      %v317 = vmul.f32 %v302, %v313
      %v318 = vmul.f32 %v303, %v314
      %v319 = vmul.f32 %v304, %v313
      %v320 = vmul.f32 %v305, %v314
      %v321 = vadd.f32 %v297, %v317
      %v322 = vadd.f32 %v298, %v318
      %v323 = vadd.f32 %v299, %v319
      %v324 = vadd.f32 %v300, %v320
      %s325 = scalar_lea.vmem %s1, 192
      %v326 = vld [vmem:[%s325] sm:$0xff]
      %v327 = vld [vmem:[%s325 + $0x8] sm:$0xff]
      %v328 = vld [vmem:[%s325 + $0x10] sm:$0x3]
      %v329 = vld [vmem:[%s325 + $0x18] sm:$0x3]
      %330 = vrot.lane.b32.xlu0 %v192, 96
      %v331 = vpop.permute.xlu0 %330
      %332 = vrot.lane.b32.xlu0 %v193, 96
      %v333 = vpop.permute.xlu0 %332
      %334 = vrot.lane.b32.xlu0 %v209, 96
      %v335 = vpop.permute.xlu0 %334
      %vm336 = vcmask 785408
      %v337 = vsel %vm336, %v331, %v333
      %v338 = vsel %vm336, %v333, %v335
      %v341 = vmul.f32 %v326, %v337
      %v342 = vmul.f32 %v327, %v338
      %v343 = vmul.f32 %v328, %v337
      %v344 = vmul.f32 %v329, %v338
      %v345 = vadd.f32 %v321, %v341
      %v346 = vadd.f32 %v322, %v342
      %v347 = vadd.f32 %v323, %v343
      %v348 = vadd.f32 %v324, %v344
      %s349 = scalar_lea.vmem %s1, 224
      %v350 = vld [vmem:[%s349] sm:$0xff]
      %v351 = vld [vmem:[%s349 + $0x8] sm:$0xff]
      %v352 = vld [vmem:[%s349 + $0x10] sm:$0x3]
      %v353 = vld [vmem:[%s349 + $0x18] sm:$0x3]
      %354 = vrot.lane.b32.xlu0 %v192, 95
      %v355 = vpop.permute.xlu0 %354
      %356 = vrot.lane.b32.xlu0 %v193, 95
      %v357 = vpop.permute.xlu0 %356
      %358 = vrot.lane.b32.xlu0 %v209, 95
      %v359 = vpop.permute.xlu0 %358
      %vm360 = vcmask 777216
      %v361 = vsel %vm360, %v355, %v357
      %v362 = vsel %vm360, %v357, %v359
      %v365 = vmul.f32 %v350, %v361
      %v366 = vmul.f32 %v351, %v362
      %v367 = vmul.f32 %v352, %v361
      %v368 = vmul.f32 %v353, %v362
      %v369 = vadd.f32 %v345, %v365
      %v370 = vadd.f32 %v346, %v366
      %v371 = vadd.f32 %v347, %v367
      %v372 = vadd.f32 %v348, %v368
      %s373 = scalar_lea.vmem %s1, 256
      %v374 = vld [vmem:[%s373] sm:$0xff]
      %v375 = vld [vmem:[%s373 + $0x8] sm:$0xff]
      %v376 = vld [vmem:[%s373 + $0x10] sm:$0x3]
      %v377 = vld [vmem:[%s373 + $0x18] sm:$0x3]
      %378 = vrot.lane.b32.xlu0 %v192, 94
      %v379 = vpop.permute.xlu0 %378
      %380 = vrot.lane.b32.xlu0 %v193, 94
      %v381 = vpop.permute.xlu0 %380
      %382 = vrot.lane.b32.xlu0 %v209, 94
      %v383 = vpop.permute.xlu0 %382
      %vm384 = vcmask 769024
      %v385 = vsel %vm384, %v379, %v381
      %v386 = vsel %vm384, %v381, %v383
      %v389 = vmul.f32 %v374, %v385
      %v390 = vmul.f32 %v375, %v386
      %v391 = vmul.f32 %v376, %v385
      %v392 = vmul.f32 %v377, %v386
      %v393 = vadd.f32 %v369, %v389
      %v394 = vadd.f32 %v370, %v390
      %v395 = vadd.f32 %v371, %v391
      %v396 = vadd.f32 %v372, %v392
      %s397 = scalar_lea.vmem [#allocation2], 1
      %v398 = vld [vmem:[%s397] ss:$4 sm:$0x7]
      %s399 = scalar_lea.vmem %s1, 288
      %v400 = vld [vmem:[%s399] sm:$0xff]
      %v401 = vld [vmem:[%s399 + $0x8] sm:$0xff]
      %v402 = vld [vmem:[%s399 + $0x10] sm:$0x3]
      %v403 = vld [vmem:[%s399 + $0x18] sm:$0x3]
      %v405 = vperm.slane %v398, 0
      %v406 = vperm.slane %v398, 1
      %v409 = vmul.f32 %v400, %v405
      %v410 = vmul.f32 %v401, %v406
      %v411 = vmul.f32 %v402, %v405
      %v412 = vmul.f32 %v403, %v406
      %v413 = vadd.f32 %v393, %v409
      %v414 = vadd.f32 %v394, %v410
      %v415 = vadd.f32 %v395, %v411
      %v416 = vadd.f32 %v396, %v412
      %s417 = scalar_lea.vmem %s1, 320
      %v418 = vld [vmem:[%s417] sm:$0xff]
      %v419 = vld [vmem:[%s417 + $0x8] sm:$0xff]
      %v420 = vld [vmem:[%s417 + $0x10] sm:$0x3]
      %v421 = vld [vmem:[%s417 + $0x18] sm:$0x3]
      %v422 = vperm.slane %v398, 2
      %423 = vrot.lane.b32.xlu0 %v405, 127
      %v424 = vpop.permute.xlu0 %423
      %425 = vrot.lane.b32.xlu0 %v406, 127
      %v426 = vpop.permute.xlu0 %425
      %427 = vrot.lane.b32.xlu0 %v422, 127
      %v428 = vpop.permute.xlu0 %427
      %v429 = vsel %vm216, %v424, %v426
      %v430 = vsel %vm216, %v426, %v428
      %v433 = vmul.f32 %v418, %v429
      %v434 = vmul.f32 %v419, %v430
      %v435 = vmul.f32 %v420, %v429
      %v436 = vmul.f32 %v421, %v430
      %v437 = vadd.f32 %v413, %v433
      %v438 = vadd.f32 %v414, %v434
      %v439 = vadd.f32 %v415, %v435
      %v440 = vadd.f32 %v416, %v436
      %s441 = scalar_lea.vmem %s1, 352
      %v442 = vld [vmem:[%s441] sm:$0xff]
      %v443 = vld [vmem:[%s441 + $0x8] sm:$0xff]
      %v444 = vld [vmem:[%s441 + $0x10] sm:$0x3]
      %v445 = vld [vmem:[%s441 + $0x18] sm:$0x3]
      %446 = vrot.lane.b32.xlu0 %v405, 126
      %v447 = vpop.permute.xlu0 %446
      %448 = vrot.lane.b32.xlu0 %v406, 126
      %v449 = vpop.permute.xlu0 %448
      %450 = vrot.lane.b32.xlu0 %v422, 126
      %v451 = vpop.permute.xlu0 %450
      %v452 = vsel %vm240, %v447, %v449
      %v453 = vsel %vm240, %v449, %v451
      %v456 = vmul.f32 %v442, %v452
      %v457 = vmul.f32 %v443, %v453
      %v458 = vmul.f32 %v444, %v452
      %v459 = vmul.f32 %v445, %v453
      %v460 = vadd.f32 %v437, %v456
      %v461 = vadd.f32 %v438, %v457
      %v462 = vadd.f32 %v439, %v458
      %v463 = vadd.f32 %v440, %v459
      %s464 = scalar_lea.vmem %s1, 384
      %v465 = vld [vmem:[%s464] sm:$0xff]
      %v466 = vld [vmem:[%s464 + $0x8] sm:$0xff]
      %v467 = vld [vmem:[%s464 + $0x10] sm:$0x3]
      %v468 = vld [vmem:[%s464 + $0x18] sm:$0x3]
      %469 = vrot.lane.b32.xlu0 %v405, 112
      %v470 = vpop.permute.xlu0 %469
      %471 = vrot.lane.b32.xlu0 %v406, 112
      %v472 = vpop.permute.xlu0 %471
      %473 = vrot.lane.b32.xlu0 %v422, 112
      %v474 = vpop.permute.xlu0 %473
      %v475 = vsel %vm264, %v470, %v472
      %v476 = vsel %vm264, %v472, %v474
      %v479 = vmul.f32 %v465, %v475
      %v480 = vmul.f32 %v466, %v476
      %v481 = vmul.f32 %v467, %v475
      %v482 = vmul.f32 %v468, %v476
      %v483 = vadd.f32 %v460, %v479
      %v484 = vadd.f32 %v461, %v480
      %v485 = vadd.f32 %v462, %v481
      %v486 = vadd.f32 %v463, %v482
      %s487 = scalar_lea.vmem %s1, 416
      %v488 = vld [vmem:[%s487] sm:$0xff]
      %v489 = vld [vmem:[%s487 + $0x8] sm:$0xff]
      %v490 = vld [vmem:[%s487 + $0x10] sm:$0x3]
      %v491 = vld [vmem:[%s487 + $0x18] sm:$0x3]
      %492 = vrot.lane.b32.xlu0 %v405, 111
      %v493 = vpop.permute.xlu0 %492
      %494 = vrot.lane.b32.xlu0 %v406, 111
      %v495 = vpop.permute.xlu0 %494
      %496 = vrot.lane.b32.xlu0 %v422, 111
      %v497 = vpop.permute.xlu0 %496
      %v498 = vsel %vm288, %v493, %v495
      %v499 = vsel %vm288, %v495, %v497
      %v502 = vmul.f32 %v488, %v498
      %v503 = vmul.f32 %v489, %v499
      %v504 = vmul.f32 %v490, %v498
      %v505 = vmul.f32 %v491, %v499
      %v506 = vadd.f32 %v483, %v502
      %v507 = vadd.f32 %v484, %v503
      %v508 = vadd.f32 %v485, %v504
      %v509 = vadd.f32 %v486, %v505
      %s510 = scalar_lea.vmem %s1, 448
      %v511 = vld [vmem:[%s510] sm:$0xff]
      %v512 = vld [vmem:[%s510 + $0x8] sm:$0xff]
      %v513 = vld [vmem:[%s510 + $0x10] sm:$0x3]
      %v514 = vld [vmem:[%s510 + $0x18] sm:$0x3]
      %515 = vrot.lane.b32.xlu0 %v405, 110
      %v516 = vpop.permute.xlu0 %515
      %517 = vrot.lane.b32.xlu0 %v406, 110
      %v518 = vpop.permute.xlu0 %517
      %519 = vrot.lane.b32.xlu0 %v422, 110
      %v520 = vpop.permute.xlu0 %519
      %v521 = vsel %vm312, %v516, %v518
      %v522 = vsel %vm312, %v518, %v520
      %v525 = vmul.f32 %v511, %v521
      %v526 = vmul.f32 %v512, %v522
      %v527 = vmul.f32 %v513, %v521
      %v528 = vmul.f32 %v514, %v522
      %v529 = vadd.f32 %v506, %v525
      %v530 = vadd.f32 %v507, %v526
      %v531 = vadd.f32 %v508, %v527
      %v532 = vadd.f32 %v509, %v528
      %s533 = scalar_lea.vmem %s1, 480
      %v534 = vld [vmem:[%s533] sm:$0xff]
      %v535 = vld [vmem:[%s533 + $0x8] sm:$0xff]
      %v536 = vld [vmem:[%s533 + $0x10] sm:$0x3]
      %v537 = vld [vmem:[%s533 + $0x18] sm:$0x3]
      %538 = vrot.lane.b32.xlu0 %v405, 96
      %v539 = vpop.permute.xlu0 %538
      %540 = vrot.lane.b32.xlu0 %v406, 96
      %v541 = vpop.permute.xlu0 %540
      %542 = vrot.lane.b32.xlu0 %v422, 96
      %v543 = vpop.permute.xlu0 %542
      %v544 = vsel %vm336, %v539, %v541
      %v545 = vsel %vm336, %v541, %v543
      %v548 = vmul.f32 %v534, %v544
      %v549 = vmul.f32 %v535, %v545
      %v550 = vmul.f32 %v536, %v544
      %v551 = vmul.f32 %v537, %v545
      %v552 = vadd.f32 %v529, %v548
      %v553 = vadd.f32 %v530, %v549
      %v554 = vadd.f32 %v531, %v550
      %v555 = vadd.f32 %v532, %v551
      %s556 = scalar_lea.vmem %s1, 512
      %v557 = vld [vmem:[%s556] sm:$0xff]
      %v558 = vld [vmem:[%s556 + $0x8] sm:$0xff]
      %v559 = vld [vmem:[%s556 + $0x10] sm:$0x3]
      %v560 = vld [vmem:[%s556 + $0x18] sm:$0x3]
      %561 = vrot.lane.b32.xlu0 %v405, 95
      %v562 = vpop.permute.xlu0 %561
      %563 = vrot.lane.b32.xlu0 %v406, 95
      %v564 = vpop.permute.xlu0 %563
      %565 = vrot.lane.b32.xlu0 %v422, 95
      %v566 = vpop.permute.xlu0 %565
      %v567 = vsel %vm360, %v562, %v564
      %v568 = vsel %vm360, %v564, %v566
      %v571 = vmul.f32 %v557, %v567
      %v572 = vmul.f32 %v558, %v568
      %v573 = vmul.f32 %v559, %v567
      %v574 = vmul.f32 %v560, %v568
      %v575 = vadd.f32 %v552, %v571
      %v576 = vadd.f32 %v553, %v572
      %v577 = vadd.f32 %v554, %v573
      %v578 = vadd.f32 %v555, %v574
      %s579 = scalar_lea.vmem %s1, 544
      %v580 = vld [vmem:[%s579] sm:$0xff]
      %v581 = vld [vmem:[%s579 + $0x8] sm:$0xff]
      %v582 = vld [vmem:[%s579 + $0x10] sm:$0x3]
      %v583 = vld [vmem:[%s579 + $0x18] sm:$0x3]
      %584 = vrot.lane.b32.xlu0 %v405, 94
      %v585 = vpop.permute.xlu0 %584
      %586 = vrot.lane.b32.xlu0 %v406, 94
      %v587 = vpop.permute.xlu0 %586
      %588 = vrot.lane.b32.xlu0 %v422, 94
      %v589 = vpop.permute.xlu0 %588
      %v590 = vsel %vm384, %v585, %v587
      %v591 = vsel %vm384, %v587, %v589
      %v594 = vmul.f32 %v580, %v590
      %v595 = vmul.f32 %v581, %v591
      %v596 = vmul.f32 %v582, %v590
      %v597 = vmul.f32 %v583, %v591
      %v598 = vadd.f32 %v575, %v594
      %v599 = vadd.f32 %v576, %v595
      %v600 = vadd.f32 %v577, %v596
      %v601 = vadd.f32 %v578, %v597
      %s602 = scalar_lea.vmem [#allocation2], 2
      %v603 = vld [vmem:[%s602] ss:$4 sm:$0x7]
      %s604 = scalar_lea.vmem %s1, 576
      %v605 = vld [vmem:[%s604] sm:$0xff]
      %v606 = vld [vmem:[%s604 + $0x8] sm:$0xff]
      %v607 = vld [vmem:[%s604 + $0x10] sm:$0x3]
      %v608 = vld [vmem:[%s604 + $0x18] sm:$0x3]
      %v610 = vperm.slane %v603, 0
      %v611 = vperm.slane %v603, 1
      %v614 = vmul.f32 %v605, %v610
      %v615 = vmul.f32 %v606, %v611
      %v616 = vmul.f32 %v607, %v610
      %v617 = vmul.f32 %v608, %v611
      %v618 = vadd.f32 %v598, %v614
      %v619 = vadd.f32 %v599, %v615
      %v620 = vadd.f32 %v600, %v616
      %v621 = vadd.f32 %v601, %v617
      %s622 = scalar_lea.vmem %s1, 608
      %v623 = vld [vmem:[%s622] sm:$0xff]
      %v624 = vld [vmem:[%s622 + $0x8] sm:$0xff]
      %v625 = vld [vmem:[%s622 + $0x10] sm:$0x3]
      %v626 = vld [vmem:[%s622 + $0x18] sm:$0x3]
      %v627 = vperm.slane %v603, 2
      %628 = vrot.lane.b32.xlu0 %v610, 127
      %v629 = vpop.permute.xlu0 %628
      %630 = vrot.lane.b32.xlu0 %v611, 127
      %v631 = vpop.permute.xlu0 %630
      %632 = vrot.lane.b32.xlu0 %v627, 127
      %v633 = vpop.permute.xlu0 %632
      %v634 = vsel %vm216, %v629, %v631
      %v635 = vsel %vm216, %v631, %v633
      %v638 = vmul.f32 %v623, %v634
      %v639 = vmul.f32 %v624, %v635
      %v640 = vmul.f32 %v625, %v634
      %v641 = vmul.f32 %v626, %v635
      %v642 = vadd.f32 %v618, %v638
      %v643 = vadd.f32 %v619, %v639
      %v644 = vadd.f32 %v620, %v640
      %v645 = vadd.f32 %v621, %v641
      %s646 = scalar_lea.vmem %s1, 640
      %v647 = vld [vmem:[%s646] sm:$0xff]
      %v648 = vld [vmem:[%s646 + $0x8] sm:$0xff]
      %v649 = vld [vmem:[%s646 + $0x10] sm:$0x3]
      %v650 = vld [vmem:[%s646 + $0x18] sm:$0x3]
      %651 = vrot.lane.b32.xlu0 %v610, 126
      %v652 = vpop.permute.xlu0 %651
      %653 = vrot.lane.b32.xlu0 %v611, 126
      %v654 = vpop.permute.xlu0 %653
      %655 = vrot.lane.b32.xlu0 %v627, 126
      %v656 = vpop.permute.xlu0 %655
      %v657 = vsel %vm240, %v652, %v654
      %v658 = vsel %vm240, %v654, %v656
      %v661 = vmul.f32 %v647, %v657
      %v662 = vmul.f32 %v648, %v658
      %v663 = vmul.f32 %v649, %v657
      %v664 = vmul.f32 %v650, %v658
      %v665 = vadd.f32 %v642, %v661
      %v666 = vadd.f32 %v643, %v662
      %v667 = vadd.f32 %v644, %v663
      %v668 = vadd.f32 %v645, %v664
      %s669 = scalar_lea.vmem %s1, 672
      %v670 = vld [vmem:[%s669] sm:$0xff]
      %v671 = vld [vmem:[%s669 + $0x8] sm:$0xff]
      %v672 = vld [vmem:[%s669 + $0x10] sm:$0x3]
      %v673 = vld [vmem:[%s669 + $0x18] sm:$0x3]
      %674 = vrot.lane.b32.xlu0 %v610, 112
      %v675 = vpop.permute.xlu0 %674
      %676 = vrot.lane.b32.xlu0 %v611, 112
      %v677 = vpop.permute.xlu0 %676
      %678 = vrot.lane.b32.xlu0 %v627, 112
      %v679 = vpop.permute.xlu0 %678
      %v680 = vsel %vm264, %v675, %v677
      %v681 = vsel %vm264, %v677, %v679
      %v684 = vmul.f32 %v670, %v680
      %v685 = vmul.f32 %v671, %v681
      %v686 = vmul.f32 %v672, %v680
      %v687 = vmul.f32 %v673, %v681
      %v688 = vadd.f32 %v665, %v684
      %v689 = vadd.f32 %v666, %v685
      %v690 = vadd.f32 %v667, %v686
      %v691 = vadd.f32 %v668, %v687
      %s692 = scalar_lea.vmem %s1, 704
      %v693 = vld [vmem:[%s692] sm:$0xff]
      %v694 = vld [vmem:[%s692 + $0x8] sm:$0xff]
      %v695 = vld [vmem:[%s692 + $0x10] sm:$0x3]
      %v696 = vld [vmem:[%s692 + $0x18] sm:$0x3]
      %697 = vrot.lane.b32.xlu0 %v610, 111
      %v698 = vpop.permute.xlu0 %697
      %699 = vrot.lane.b32.xlu0 %v611, 111
      %v700 = vpop.permute.xlu0 %699
      %701 = vrot.lane.b32.xlu0 %v627, 111
      %v702 = vpop.permute.xlu0 %701
      %v703 = vsel %vm288, %v698, %v700
      %v704 = vsel %vm288, %v700, %v702
      %v707 = vmul.f32 %v693, %v703
      %v708 = vmul.f32 %v694, %v704
      %v709 = vmul.f32 %v695, %v703
      %v710 = vmul.f32 %v696, %v704
      %v711 = vadd.f32 %v688, %v707
      %v712 = vadd.f32 %v689, %v708
      %v713 = vadd.f32 %v690, %v709
      %v714 = vadd.f32 %v691, %v710
      %s715 = scalar_lea.vmem %s1, 736
      %v716 = vld [vmem:[%s715] sm:$0xff]
      %v717 = vld [vmem:[%s715 + $0x8] sm:$0xff]
      %v718 = vld [vmem:[%s715 + $0x10] sm:$0x3]
      %v719 = vld [vmem:[%s715 + $0x18] sm:$0x3]
      %720 = vrot.lane.b32.xlu0 %v610, 110
      %v721 = vpop.permute.xlu0 %720
      %722 = vrot.lane.b32.xlu0 %v611, 110
      %v723 = vpop.permute.xlu0 %722
      %724 = vrot.lane.b32.xlu0 %v627, 110
      %v725 = vpop.permute.xlu0 %724
      %v726 = vsel %vm312, %v721, %v723
      %v727 = vsel %vm312, %v723, %v725
      %v730 = vmul.f32 %v716, %v726
      %v731 = vmul.f32 %v717, %v727
      %v732 = vmul.f32 %v718, %v726
      %v733 = vmul.f32 %v719, %v727
      %v734 = vadd.f32 %v711, %v730
      %v735 = vadd.f32 %v712, %v731
      %v736 = vadd.f32 %v713, %v732
      %v737 = vadd.f32 %v714, %v733
      %s738 = scalar_lea.vmem %s1, 768
      %v739 = vld [vmem:[%s738] sm:$0xff]
      %v740 = vld [vmem:[%s738 + $0x8] sm:$0xff]
      %v741 = vld [vmem:[%s738 + $0x10] sm:$0x3]
      %v742 = vld [vmem:[%s738 + $0x18] sm:$0x3]
      %743 = vrot.lane.b32.xlu0 %v610, 96
      %v744 = vpop.permute.xlu0 %743
      %745 = vrot.lane.b32.xlu0 %v611, 96
      %v746 = vpop.permute.xlu0 %745
      %747 = vrot.lane.b32.xlu0 %v627, 96
      %v748 = vpop.permute.xlu0 %747
      %v749 = vsel %vm336, %v744, %v746
      %v750 = vsel %vm336, %v746, %v748
      %v753 = vmul.f32 %v739, %v749
      %v754 = vmul.f32 %v740, %v750
      %v755 = vmul.f32 %v741, %v749
      %v756 = vmul.f32 %v742, %v750
      %v757 = vadd.f32 %v734, %v753
      %v758 = vadd.f32 %v735, %v754
      %v759 = vadd.f32 %v736, %v755
      %v760 = vadd.f32 %v737, %v756
      %s761 = scalar_lea.vmem %s1, 800
      %v762 = vld [vmem:[%s761] sm:$0xff]
      %v763 = vld [vmem:[%s761 + $0x8] sm:$0xff]
      %v764 = vld [vmem:[%s761 + $0x10] sm:$0x3]
      %v765 = vld [vmem:[%s761 + $0x18] sm:$0x3]
      %766 = vrot.lane.b32.xlu0 %v610, 95
      %v767 = vpop.permute.xlu0 %766
      %768 = vrot.lane.b32.xlu0 %v611, 95
      %v769 = vpop.permute.xlu0 %768
      %770 = vrot.lane.b32.xlu0 %v627, 95
      %v771 = vpop.permute.xlu0 %770
      %v772 = vsel %vm360, %v767, %v769
      %v773 = vsel %vm360, %v769, %v771
      %v776 = vmul.f32 %v762, %v772
      %v777 = vmul.f32 %v763, %v773
      %v778 = vmul.f32 %v764, %v772
      %v779 = vmul.f32 %v765, %v773
      %v780 = vadd.f32 %v757, %v776
      %v781 = vadd.f32 %v758, %v777
      %v782 = vadd.f32 %v759, %v778
      %v783 = vadd.f32 %v760, %v779
      %s784 = scalar_lea.vmem %s1, 832
      %v785 = vld [vmem:[%s784] sm:$0xff]
      %v786 = vld [vmem:[%s784 + $0x8] sm:$0xff]
      %v787 = vld [vmem:[%s784 + $0x10] sm:$0x3]
      %v788 = vld [vmem:[%s784 + $0x18] sm:$0x3]
      %789 = vrot.lane.b32.xlu0 %v610, 94
      %v790 = vpop.permute.xlu0 %789
      %791 = vrot.lane.b32.xlu0 %v611, 94
      %v792 = vpop.permute.xlu0 %791
      %793 = vrot.lane.b32.xlu0 %v627, 94
      %v794 = vpop.permute.xlu0 %793
      %v795 = vsel %vm384, %v790, %v792
      %v796 = vsel %vm384, %v792, %v794
      %v799 = vmul.f32 %v785, %v795
      %v800 = vmul.f32 %v786, %v796
      %v801 = vmul.f32 %v787, %v795
      %v802 = vmul.f32 %v788, %v796
      %v803 = vadd.f32 %v780, %v799
      %v804 = vadd.f32 %v781, %v800
      %v805 = vadd.f32 %v782, %v801
      %v806 = vadd.f32 %v783, %v802
      %807 = vst [vmem:[%s177] sm:$0xff] %v803
      %808 = vst [vmem:[%s177 + $0x8] sm:$0xff] %v804
      %809 = vst [vmem:[%s177 + $0x10] sm:$0x3] %v805
      %810 = vst [vmem:[%s177 + $0x18] sm:$0x3] %v806
      %s811 = scalar_lea.vmem %s170, 8
      %v812 = vld [vmem:[%s811] sm:$0x77]
      %813 = vst [vmem:[#allocation2] sm:$0x77] %v812
      %v814 = vld [vmem:[%s2] sm:$0xff]
      %v815 = vld [vmem:[%s2 + $0x8] sm:$0xff]
      %v816 = vld [vmem:[%s2 + $0x10] sm:$0x3]
      %v817 = vld [vmem:[%s2 + $0x18] sm:$0x3]
      %v818 = vld [vmem:[#allocation2] ss:$4 sm:$0x7]
      %v819 = vld [vmem:[%s1] sm:$0xff]
      %v820 = vld [vmem:[%s1 + $0x8] sm:$0xff]
      %v821 = vld [vmem:[%s1 + $0x10] sm:$0x3]
      %v822 = vld [vmem:[%s1 + $0x18] sm:$0x3]
      %v824 = vperm.slane %v818, 0
      %v825 = vperm.slane %v818, 1
      %v828 = vmul.f32 %v819, %v824
      %v829 = vmul.f32 %v820, %v825
      %v830 = vmul.f32 %v821, %v824
      %v831 = vmul.f32 %v822, %v825
      %v832 = vadd.f32 %v814, %v828
      %v833 = vadd.f32 %v815, %v829
      %v834 = vadd.f32 %v816, %v830
      %v835 = vadd.f32 %v817, %v831
      %v836 = vld [vmem:[%s204] sm:$0xff]
      %v837 = vld [vmem:[%s204 + $0x8] sm:$0xff]
      %v838 = vld [vmem:[%s204 + $0x10] sm:$0x3]
      %v839 = vld [vmem:[%s204 + $0x18] sm:$0x3]
      %v840 = vperm.slane %v818, 2
      %841 = vrot.lane.b32.xlu0 %v824, 127
      %v842 = vpop.permute.xlu0 %841
      %843 = vrot.lane.b32.xlu0 %v825, 127
      %v844 = vpop.permute.xlu0 %843
      %845 = vrot.lane.b32.xlu0 %v840, 127
      %v846 = vpop.permute.xlu0 %845
      %v847 = vsel %vm216, %v842, %v844
      %v848 = vsel %vm216, %v844, %v846
      %v851 = vmul.f32 %v836, %v847
      %v852 = vmul.f32 %v837, %v848
      %v853 = vmul.f32 %v838, %v847
      %v854 = vmul.f32 %v839, %v848
      %v855 = vadd.f32 %v832, %v851
      %v856 = vadd.f32 %v833, %v852
      %v857 = vadd.f32 %v834, %v853
      %v858 = vadd.f32 %v835, %v854
      %v859 = vld [vmem:[%s229] sm:$0xff]
      %v860 = vld [vmem:[%s229 + $0x8] sm:$0xff]
      %v861 = vld [vmem:[%s229 + $0x10] sm:$0x3]
      %v862 = vld [vmem:[%s229 + $0x18] sm:$0x3]
      %863 = vrot.lane.b32.xlu0 %v824, 126
      %v864 = vpop.permute.xlu0 %863
      %865 = vrot.lane.b32.xlu0 %v825, 126
      %v866 = vpop.permute.xlu0 %865
      %867 = vrot.lane.b32.xlu0 %v840, 126
      %v868 = vpop.permute.xlu0 %867
      %v869 = vsel %vm240, %v864, %v866
      %v870 = vsel %vm240, %v866, %v868
      %v873 = vmul.f32 %v859, %v869
      %v874 = vmul.f32 %v860, %v870
      %v875 = vmul.f32 %v861, %v869
      %v876 = vmul.f32 %v862, %v870
      %v877 = vadd.f32 %v855, %v873
      %v878 = vadd.f32 %v856, %v874
      %v879 = vadd.f32 %v857, %v875
      %v880 = vadd.f32 %v858, %v876
      %v881 = vld [vmem:[%s253] sm:$0xff]
      %v882 = vld [vmem:[%s253 + $0x8] sm:$0xff]
      %v883 = vld [vmem:[%s253 + $0x10] sm:$0x3]
      %v884 = vld [vmem:[%s253 + $0x18] sm:$0x3]
      %885 = vrot.lane.b32.xlu0 %v824, 112
      %v886 = vpop.permute.xlu0 %885
      %887 = vrot.lane.b32.xlu0 %v825, 112
      %v888 = vpop.permute.xlu0 %887
      %889 = vrot.lane.b32.xlu0 %v840, 112
      %v890 = vpop.permute.xlu0 %889
      %v891 = vsel %vm264, %v886, %v888
      %v892 = vsel %vm264, %v888, %v890
      %v895 = vmul.f32 %v881, %v891
      %v896 = vmul.f32 %v882, %v892
      %v897 = vmul.f32 %v883, %v891
      %v898 = vmul.f32 %v884, %v892
      %v899 = vadd.f32 %v877, %v895
      %v900 = vadd.f32 %v878, %v896
      %v901 = vadd.f32 %v879, %v897
      %v902 = vadd.f32 %v880, %v898
      %v903 = vld [vmem:[%s277] sm:$0xff]
      %v904 = vld [vmem:[%s277 + $0x8] sm:$0xff]
      %v905 = vld [vmem:[%s277 + $0x10] sm:$0x3]
      %v906 = vld [vmem:[%s277 + $0x18] sm:$0x3]
      %907 = vrot.lane.b32.xlu0 %v824, 111
      %v908 = vpop.permute.xlu0 %907
      %909 = vrot.lane.b32.xlu0 %v825, 111
      %v910 = vpop.permute.xlu0 %909
      %911 = vrot.lane.b32.xlu0 %v840, 111
      %v912 = vpop.permute.xlu0 %911
      %v913 = vsel %vm288, %v908, %v910
      %v914 = vsel %vm288, %v910, %v912
      %v917 = vmul.f32 %v903, %v913
      %v918 = vmul.f32 %v904, %v914
      %v919 = vmul.f32 %v905, %v913
      %v920 = vmul.f32 %v906, %v914
      %v921 = vadd.f32 %v899, %v917
      %v922 = vadd.f32 %v900, %v918
      %v923 = vadd.f32 %v901, %v919
      %v924 = vadd.f32 %v902, %v920
      %v925 = vld [vmem:[%s301] sm:$0xff]
      %v926 = vld [vmem:[%s301 + $0x8] sm:$0xff]
      %v927 = vld [vmem:[%s301 + $0x10] sm:$0x3]
      %v928 = vld [vmem:[%s301 + $0x18] sm:$0x3]
      %929 = vrot.lane.b32.xlu0 %v824, 110
      %v930 = vpop.permute.xlu0 %929
      %931 = vrot.lane.b32.xlu0 %v825, 110
      %v932 = vpop.permute.xlu0 %931
      %933 = vrot.lane.b32.xlu0 %v840, 110
      %v934 = vpop.permute.xlu0 %933
      %v935 = vsel %vm312, %v930, %v932
      %v936 = vsel %vm312, %v932, %v934
      %v939 = vmul.f32 %v925, %v935
      %v940 = vmul.f32 %v926, %v936
      %v941 = vmul.f32 %v927, %v935
      %v942 = vmul.f32 %v928, %v936
      %v943 = vadd.f32 %v921, %v939
      %v944 = vadd.f32 %v922, %v940
      %v945 = vadd.f32 %v923, %v941
      %v946 = vadd.f32 %v924, %v942
      %v947 = vld [vmem:[%s325] sm:$0xff]
      %v948 = vld [vmem:[%s325 + $0x8] sm:$0xff]
      %v949 = vld [vmem:[%s325 + $0x10] sm:$0x3]
      %v950 = vld [vmem:[%s325 + $0x18] sm:$0x3]
      %951 = vrot.lane.b32.xlu0 %v824, 96
      %v952 = vpop.permute.xlu0 %951
      %953 = vrot.lane.b32.xlu0 %v825, 96
      %v954 = vpop.permute.xlu0 %953
      %955 = vrot.lane.b32.xlu0 %v840, 96
      %v956 = vpop.permute.xlu0 %955
      %v957 = vsel %vm336, %v952, %v954
      %v958 = vsel %vm336, %v954, %v956
      %v961 = vmul.f32 %v947, %v957
      %v962 = vmul.f32 %v948, %v958
      %v963 = vmul.f32 %v949, %v957
      %v964 = vmul.f32 %v950, %v958
      %v965 = vadd.f32 %v943, %v961
      %v966 = vadd.f32 %v944, %v962
      %v967 = vadd.f32 %v945, %v963
      %v968 = vadd.f32 %v946, %v964
      %v969 = vld [vmem:[%s349] sm:$0xff]
      %v970 = vld [vmem:[%s349 + $0x8] sm:$0xff]
      %v971 = vld [vmem:[%s349 + $0x10] sm:$0x3]
      %v972 = vld [vmem:[%s349 + $0x18] sm:$0x3]
      %973 = vrot.lane.b32.xlu0 %v824, 95
      %v974 = vpop.permute.xlu0 %973
      %975 = vrot.lane.b32.xlu0 %v825, 95
      %v976 = vpop.permute.xlu0 %975
      %977 = vrot.lane.b32.xlu0 %v840, 95
      %v978 = vpop.permute.xlu0 %977
      %v979 = vsel %vm360, %v974, %v976
      %v980 = vsel %vm360, %v976, %v978
      %v983 = vmul.f32 %v969, %v979
      %v984 = vmul.f32 %v970, %v980
      %v985 = vmul.f32 %v971, %v979
      %v986 = vmul.f32 %v972, %v980
      %v987 = vadd.f32 %v965, %v983
      %v988 = vadd.f32 %v966, %v984
      %v989 = vadd.f32 %v967, %v985
      %v990 = vadd.f32 %v968, %v986
      %v991 = vld [vmem:[%s373] sm:$0xff]
      %v992 = vld [vmem:[%s373 + $0x8] sm:$0xff]
      %v993 = vld [vmem:[%s373 + $0x10] sm:$0x3]
      %v994 = vld [vmem:[%s373 + $0x18] sm:$0x3]
      %995 = vrot.lane.b32.xlu0 %v824, 94
      %v996 = vpop.permute.xlu0 %995
      %997 = vrot.lane.b32.xlu0 %v825, 94
      %v998 = vpop.permute.xlu0 %997
      %999 = vrot.lane.b32.xlu0 %v840, 94
      %v1000 = vpop.permute.xlu0 %999
      %v1001 = vsel %vm384, %v996, %v998
      %v1002 = vsel %vm384, %v998, %v1000
      %v1005 = vmul.f32 %v991, %v1001
      %v1006 = vmul.f32 %v992, %v1002
      %v1007 = vmul.f32 %v993, %v1001
      %v1008 = vmul.f32 %v994, %v1002
      %v1009 = vadd.f32 %v987, %v1005
      %v1010 = vadd.f32 %v988, %v1006
      %v1011 = vadd.f32 %v989, %v1007
      %v1012 = vadd.f32 %v990, %v1008
      %v1013 = vld [vmem:[%s397] ss:$4 sm:$0x7]
      %v1014 = vld [vmem:[%s399] sm:$0xff]
      %v1015 = vld [vmem:[%s399 + $0x8] sm:$0xff]
      %v1016 = vld [vmem:[%s399 + $0x10] sm:$0x3]
      %v1017 = vld [vmem:[%s399 + $0x18] sm:$0x3]
      %v1019 = vperm.slane %v1013, 0
      %v1020 = vperm.slane %v1013, 1
      %v1023 = vmul.f32 %v1014, %v1019
      %v1024 = vmul.f32 %v1015, %v1020
      %v1025 = vmul.f32 %v1016, %v1019
      %v1026 = vmul.f32 %v1017, %v1020
      %v1027 = vadd.f32 %v1009, %v1023
      %v1028 = vadd.f32 %v1010, %v1024
      %v1029 = vadd.f32 %v1011, %v1025
      %v1030 = vadd.f32 %v1012, %v1026
      %v1031 = vld [vmem:[%s417] sm:$0xff]
      %v1032 = vld [vmem:[%s417 + $0x8] sm:$0xff]
      %v1033 = vld [vmem:[%s417 + $0x10] sm:$0x3]
      %v1034 = vld [vmem:[%s417 + $0x18] sm:$0x3]
      %v1035 = vperm.slane %v1013, 2
      %1036 = vrot.lane.b32.xlu0 %v1019, 127
      %v1037 = vpop.permute.xlu0 %1036
      %1038 = vrot.lane.b32.xlu0 %v1020, 127
      %v1039 = vpop.permute.xlu0 %1038
      %1040 = vrot.lane.b32.xlu0 %v1035, 127
      %v1041 = vpop.permute.xlu0 %1040
      %v1042 = vsel %vm216, %v1037, %v1039
      %v1043 = vsel %vm216, %v1039, %v1041
      %v1046 = vmul.f32 %v1031, %v1042
      %v1047 = vmul.f32 %v1032, %v1043
      %v1048 = vmul.f32 %v1033, %v1042
      %v1049 = vmul.f32 %v1034, %v1043
      %v1050 = vadd.f32 %v1027, %v1046
      %v1051 = vadd.f32 %v1028, %v1047
      %v1052 = vadd.f32 %v1029, %v1048
      %v1053 = vadd.f32 %v1030, %v1049
      %v1054 = vld [vmem:[%s441] sm:$0xff]
      %v1055 = vld [vmem:[%s441 + $0x8] sm:$0xff]
      %v1056 = vld [vmem:[%s441 + $0x10] sm:$0x3]
      %v1057 = vld [vmem:[%s441 + $0x18] sm:$0x3]
      %1058 = vrot.lane.b32.xlu0 %v1019, 126
      %v1059 = vpop.permute.xlu0 %1058
      %1060 = vrot.lane.b32.xlu0 %v1020, 126
      %v1061 = vpop.permute.xlu0 %1060
      %1062 = vrot.lane.b32.xlu0 %v1035, 126
      %v1063 = vpop.permute.xlu0 %1062
      %v1064 = vsel %vm240, %v1059, %v1061
      %v1065 = vsel %vm240, %v1061, %v1063
      %v1068 = vmul.f32 %v1054, %v1064
      %v1069 = vmul.f32 %v1055, %v1065
      %v1070 = vmul.f32 %v1056, %v1064
      %v1071 = vmul.f32 %v1057, %v1065
      %v1072 = vadd.f32 %v1050, %v1068
      %v1073 = vadd.f32 %v1051, %v1069
      %v1074 = vadd.f32 %v1052, %v1070
      %v1075 = vadd.f32 %v1053, %v1071
      %v1076 = vld [vmem:[%s464] sm:$0xff]
      %v1077 = vld [vmem:[%s464 + $0x8] sm:$0xff]
      %v1078 = vld [vmem:[%s464 + $0x10] sm:$0x3]
      %v1079 = vld [vmem:[%s464 + $0x18] sm:$0x3]
      %1080 = vrot.lane.b32.xlu0 %v1019, 112
      %v1081 = vpop.permute.xlu0 %1080
      %1082 = vrot.lane.b32.xlu0 %v1020, 112
      %v1083 = vpop.permute.xlu0 %1082
      %1084 = vrot.lane.b32.xlu0 %v1035, 112
      %v1085 = vpop.permute.xlu0 %1084
      %v1086 = vsel %vm264, %v1081, %v1083
      %v1087 = vsel %vm264, %v1083, %v1085
      %v1090 = vmul.f32 %v1076, %v1086
      %v1091 = vmul.f32 %v1077, %v1087
      %v1092 = vmul.f32 %v1078, %v1086
      %v1093 = vmul.f32 %v1079, %v1087
      %v1094 = vadd.f32 %v1072, %v1090
      %v1095 = vadd.f32 %v1073, %v1091
      %v1096 = vadd.f32 %v1074, %v1092
      %v1097 = vadd.f32 %v1075, %v1093
      %v1098 = vld [vmem:[%s487] sm:$0xff]
      %v1099 = vld [vmem:[%s487 + $0x8] sm:$0xff]
      %v1100 = vld [vmem:[%s487 + $0x10] sm:$0x3]
      %v1101 = vld [vmem:[%s487 + $0x18] sm:$0x3]
      %1102 = vrot.lane.b32.xlu0 %v1019, 111
      %v1103 = vpop.permute.xlu0 %1102
      %1104 = vrot.lane.b32.xlu0 %v1020, 111
      %v1105 = vpop.permute.xlu0 %1104
      %1106 = vrot.lane.b32.xlu0 %v1035, 111
      %v1107 = vpop.permute.xlu0 %1106
      %v1108 = vsel %vm288, %v1103, %v1105
      %v1109 = vsel %vm288, %v1105, %v1107
      %v1112 = vmul.f32 %v1098, %v1108
      %v1113 = vmul.f32 %v1099, %v1109
      %v1114 = vmul.f32 %v1100, %v1108
      %v1115 = vmul.f32 %v1101, %v1109
      %v1116 = vadd.f32 %v1094, %v1112
      %v1117 = vadd.f32 %v1095, %v1113
      %v1118 = vadd.f32 %v1096, %v1114
      %v1119 = vadd.f32 %v1097, %v1115
      %v1120 = vld [vmem:[%s510] sm:$0xff]
      %v1121 = vld [vmem:[%s510 + $0x8] sm:$0xff]
      %v1122 = vld [vmem:[%s510 + $0x10] sm:$0x3]
      %v1123 = vld [vmem:[%s510 + $0x18] sm:$0x3]
      %1124 = vrot.lane.b32.xlu0 %v1019, 110
      %v1125 = vpop.permute.xlu0 %1124
      %1126 = vrot.lane.b32.xlu0 %v1020, 110
      %v1127 = vpop.permute.xlu0 %1126
      %1128 = vrot.lane.b32.xlu0 %v1035, 110
      %v1129 = vpop.permute.xlu0 %1128
      %v1130 = vsel %vm312, %v1125, %v1127
      %v1131 = vsel %vm312, %v1127, %v1129
      %v1134 = vmul.f32 %v1120, %v1130
      %v1135 = vmul.f32 %v1121, %v1131
      %v1136 = vmul.f32 %v1122, %v1130
      %v1137 = vmul.f32 %v1123, %v1131
      %v1138 = vadd.f32 %v1116, %v1134
      %v1139 = vadd.f32 %v1117, %v1135
      %v1140 = vadd.f32 %v1118, %v1136
      %v1141 = vadd.f32 %v1119, %v1137
      %v1142 = vld [vmem:[%s533] sm:$0xff]
      %v1143 = vld [vmem:[%s533 + $0x8] sm:$0xff]
      %v1144 = vld [vmem:[%s533 + $0x10] sm:$0x3]
      %v1145 = vld [vmem:[%s533 + $0x18] sm:$0x3]
      %1146 = vrot.lane.b32.xlu0 %v1019, 96
      %v1147 = vpop.permute.xlu0 %1146
      %1148 = vrot.lane.b32.xlu0 %v1020, 96
      %v1149 = vpop.permute.xlu0 %1148
      %1150 = vrot.lane.b32.xlu0 %v1035, 96
      %v1151 = vpop.permute.xlu0 %1150
      %v1152 = vsel %vm336, %v1147, %v1149
      %v1153 = vsel %vm336, %v1149, %v1151
      %v1156 = vmul.f32 %v1142, %v1152
      %v1157 = vmul.f32 %v1143, %v1153
      %v1158 = vmul.f32 %v1144, %v1152
      %v1159 = vmul.f32 %v1145, %v1153
      %v1160 = vadd.f32 %v1138, %v1156
      %v1161 = vadd.f32 %v1139, %v1157
      %v1162 = vadd.f32 %v1140, %v1158
      %v1163 = vadd.f32 %v1141, %v1159
      %v1164 = vld [vmem:[%s556] sm:$0xff]
      %v1165 = vld [vmem:[%s556 + $0x8] sm:$0xff]
      %v1166 = vld [vmem:[%s556 + $0x10] sm:$0x3]
      %v1167 = vld [vmem:[%s556 + $0x18] sm:$0x3]
      %1168 = vrot.lane.b32.xlu0 %v1019, 95
      %v1169 = vpop.permute.xlu0 %1168
      %1170 = vrot.lane.b32.xlu0 %v1020, 95
      %v1171 = vpop.permute.xlu0 %1170
      %1172 = vrot.lane.b32.xlu0 %v1035, 95
      %v1173 = vpop.permute.xlu0 %1172
      %v1174 = vsel %vm360, %v1169, %v1171
      %v1175 = vsel %vm360, %v1171, %v1173
      %v1178 = vmul.f32 %v1164, %v1174
      %v1179 = vmul.f32 %v1165, %v1175
      %v1180 = vmul.f32 %v1166, %v1174
      %v1181 = vmul.f32 %v1167, %v1175
      %v1182 = vadd.f32 %v1160, %v1178
      %v1183 = vadd.f32 %v1161, %v1179
      %v1184 = vadd.f32 %v1162, %v1180
      %v1185 = vadd.f32 %v1163, %v1181
      %v1186 = vld [vmem:[%s579] sm:$0xff]
      %v1187 = vld [vmem:[%s579 + $0x8] sm:$0xff]
      %v1188 = vld [vmem:[%s579 + $0x10] sm:$0x3]
      %v1189 = vld [vmem:[%s579 + $0x18] sm:$0x3]
      %1190 = vrot.lane.b32.xlu0 %v1019, 94
      %v1191 = vpop.permute.xlu0 %1190
      %1192 = vrot.lane.b32.xlu0 %v1020, 94
      %v1193 = vpop.permute.xlu0 %1192
      %1194 = vrot.lane.b32.xlu0 %v1035, 94
      %v1195 = vpop.permute.xlu0 %1194
      %v1196 = vsel %vm384, %v1191, %v1193
      %v1197 = vsel %vm384, %v1193, %v1195
      %v1200 = vmul.f32 %v1186, %v1196
      %v1201 = vmul.f32 %v1187, %v1197
      %v1202 = vmul.f32 %v1188, %v1196
      %v1203 = vmul.f32 %v1189, %v1197
      %v1204 = vadd.f32 %v1182, %v1200
      %v1205 = vadd.f32 %v1183, %v1201
      %v1206 = vadd.f32 %v1184, %v1202
      %v1207 = vadd.f32 %v1185, %v1203
      %v1208 = vld [vmem:[%s602] ss:$4 sm:$0x7]
      %v1209 = vld [vmem:[%s604] sm:$0xff]
      %v1210 = vld [vmem:[%s604 + $0x8] sm:$0xff]
      %v1211 = vld [vmem:[%s604 + $0x10] sm:$0x3]
      %v1212 = vld [vmem:[%s604 + $0x18] sm:$0x3]
      %v1214 = vperm.slane %v1208, 0
      %v1215 = vperm.slane %v1208, 1
      %v1218 = vmul.f32 %v1209, %v1214
      %v1219 = vmul.f32 %v1210, %v1215
      %v1220 = vmul.f32 %v1211, %v1214
      %v1221 = vmul.f32 %v1212, %v1215
      %v1222 = vadd.f32 %v1204, %v1218
      %v1223 = vadd.f32 %v1205, %v1219
      %v1224 = vadd.f32 %v1206, %v1220
      %v1225 = vadd.f32 %v1207, %v1221
      %v1226 = vld [vmem:[%s622] sm:$0xff]
      %v1227 = vld [vmem:[%s622 + $0x8] sm:$0xff]
      %v1228 = vld [vmem:[%s622 + $0x10] sm:$0x3]
      %v1229 = vld [vmem:[%s622 + $0x18] sm:$0x3]
      %v1230 = vperm.slane %v1208, 2
      %1231 = vrot.lane.b32.xlu0 %v1214, 127
      %v1232 = vpop.permute.xlu0 %1231
      %1233 = vrot.lane.b32.xlu0 %v1215, 127
      %v1234 = vpop.permute.xlu0 %1233
      %1235 = vrot.lane.b32.xlu0 %v1230, 127
      %v1236 = vpop.permute.xlu0 %1235
      %v1237 = vsel %vm216, %v1232, %v1234
      %v1238 = vsel %vm216, %v1234, %v1236
      %v1241 = vmul.f32 %v1226, %v1237
      %v1242 = vmul.f32 %v1227, %v1238
      %v1243 = vmul.f32 %v1228, %v1237
      %v1244 = vmul.f32 %v1229, %v1238
      %v1245 = vadd.f32 %v1222, %v1241
      %v1246 = vadd.f32 %v1223, %v1242
      %v1247 = vadd.f32 %v1224, %v1243
      %v1248 = vadd.f32 %v1225, %v1244
      %v1249 = vld [vmem:[%s646] sm:$0xff]
      %v1250 = vld [vmem:[%s646 + $0x8] sm:$0xff]
      %v1251 = vld [vmem:[%s646 + $0x10] sm:$0x3]
      %v1252 = vld [vmem:[%s646 + $0x18] sm:$0x3]
      %1253 = vrot.lane.b32.xlu0 %v1214, 126
      %v1254 = vpop.permute.xlu0 %1253
      %1255 = vrot.lane.b32.xlu0 %v1215, 126
      %v1256 = vpop.permute.xlu0 %1255
      %1257 = vrot.lane.b32.xlu0 %v1230, 126
      %v1258 = vpop.permute.xlu0 %1257
      %v1259 = vsel %vm240, %v1254, %v1256
      %v1260 = vsel %vm240, %v1256, %v1258
      %v1263 = vmul.f32 %v1249, %v1259
      %v1264 = vmul.f32 %v1250, %v1260
      %v1265 = vmul.f32 %v1251, %v1259
      %v1266 = vmul.f32 %v1252, %v1260
      %v1267 = vadd.f32 %v1245, %v1263
      %v1268 = vadd.f32 %v1246, %v1264
      %v1269 = vadd.f32 %v1247, %v1265
      %v1270 = vadd.f32 %v1248, %v1266
      %v1271 = vld [vmem:[%s669] sm:$0xff]
      %v1272 = vld [vmem:[%s669 + $0x8] sm:$0xff]
      %v1273 = vld [vmem:[%s669 + $0x10] sm:$0x3]
      %v1274 = vld [vmem:[%s669 + $0x18] sm:$0x3]
      %1275 = vrot.lane.b32.xlu0 %v1214, 112
      %v1276 = vpop.permute.xlu0 %1275
      %1277 = vrot.lane.b32.xlu0 %v1215, 112
      %v1278 = vpop.permute.xlu0 %1277
      %1279 = vrot.lane.b32.xlu0 %v1230, 112
      %v1280 = vpop.permute.xlu0 %1279
      %v1281 = vsel %vm264, %v1276, %v1278
      %v1282 = vsel %vm264, %v1278, %v1280
      %v1285 = vmul.f32 %v1271, %v1281
      %v1286 = vmul.f32 %v1272, %v1282
      %v1287 = vmul.f32 %v1273, %v1281
      %v1288 = vmul.f32 %v1274, %v1282
      %v1289 = vadd.f32 %v1267, %v1285
      %v1290 = vadd.f32 %v1268, %v1286
      %v1291 = vadd.f32 %v1269, %v1287
      %v1292 = vadd.f32 %v1270, %v1288
      %v1293 = vld [vmem:[%s692] sm:$0xff]
      %v1294 = vld [vmem:[%s692 + $0x8] sm:$0xff]
      %v1295 = vld [vmem:[%s692 + $0x10] sm:$0x3]
      %v1296 = vld [vmem:[%s692 + $0x18] sm:$0x3]
      %1297 = vrot.lane.b32.xlu0 %v1214, 111
      %v1298 = vpop.permute.xlu0 %1297
      %1299 = vrot.lane.b32.xlu0 %v1215, 111
      %v1300 = vpop.permute.xlu0 %1299
      %1301 = vrot.lane.b32.xlu0 %v1230, 111
      %v1302 = vpop.permute.xlu0 %1301
      %v1303 = vsel %vm288, %v1298, %v1300
      %v1304 = vsel %vm288, %v1300, %v1302
      %v1307 = vmul.f32 %v1293, %v1303
      %v1308 = vmul.f32 %v1294, %v1304
      %v1309 = vmul.f32 %v1295, %v1303
      %v1310 = vmul.f32 %v1296, %v1304
      %v1311 = vadd.f32 %v1289, %v1307
      %v1312 = vadd.f32 %v1290, %v1308
      %v1313 = vadd.f32 %v1291, %v1309
      %v1314 = vadd.f32 %v1292, %v1310
      %v1315 = vld [vmem:[%s715] sm:$0xff]
      %v1316 = vld [vmem:[%s715 + $0x8] sm:$0xff]
      %v1317 = vld [vmem:[%s715 + $0x10] sm:$0x3]
      %v1318 = vld [vmem:[%s715 + $0x18] sm:$0x3]
      %1319 = vrot.lane.b32.xlu0 %v1214, 110
      %v1320 = vpop.permute.xlu0 %1319
      %1321 = vrot.lane.b32.xlu0 %v1215, 110
      %v1322 = vpop.permute.xlu0 %1321
      %1323 = vrot.lane.b32.xlu0 %v1230, 110
      %v1324 = vpop.permute.xlu0 %1323
      %v1325 = vsel %vm312, %v1320, %v1322
      %v1326 = vsel %vm312, %v1322, %v1324
      %v1329 = vmul.f32 %v1315, %v1325
      %v1330 = vmul.f32 %v1316, %v1326
      %v1331 = vmul.f32 %v1317, %v1325
      %v1332 = vmul.f32 %v1318, %v1326
      %v1333 = vadd.f32 %v1311, %v1329
      %v1334 = vadd.f32 %v1312, %v1330
      %v1335 = vadd.f32 %v1313, %v1331
      %v1336 = vadd.f32 %v1314, %v1332
      %v1337 = vld [vmem:[%s738] sm:$0xff]
      %v1338 = vld [vmem:[%s738 + $0x8] sm:$0xff]
      %v1339 = vld [vmem:[%s738 + $0x10] sm:$0x3]
      %v1340 = vld [vmem:[%s738 + $0x18] sm:$0x3]
      %1341 = vrot.lane.b32.xlu0 %v1214, 96
      %v1342 = vpop.permute.xlu0 %1341
      %1343 = vrot.lane.b32.xlu0 %v1215, 96
      %v1344 = vpop.permute.xlu0 %1343
      %1345 = vrot.lane.b32.xlu0 %v1230, 96
      %v1346 = vpop.permute.xlu0 %1345
      %v1347 = vsel %vm336, %v1342, %v1344
      %v1348 = vsel %vm336, %v1344, %v1346
      %v1351 = vmul.f32 %v1337, %v1347
      %v1352 = vmul.f32 %v1338, %v1348
      %v1353 = vmul.f32 %v1339, %v1347
      %v1354 = vmul.f32 %v1340, %v1348
      %v1355 = vadd.f32 %v1333, %v1351
      %v1356 = vadd.f32 %v1334, %v1352
      %v1357 = vadd.f32 %v1335, %v1353
      %v1358 = vadd.f32 %v1336, %v1354
      %v1359 = vld [vmem:[%s761] sm:$0xff]
      %v1360 = vld [vmem:[%s761 + $0x8] sm:$0xff]
      %v1361 = vld [vmem:[%s761 + $0x10] sm:$0x3]
      %v1362 = vld [vmem:[%s761 + $0x18] sm:$0x3]
      %1363 = vrot.lane.b32.xlu0 %v1214, 95
      %v1364 = vpop.permute.xlu0 %1363
      %1365 = vrot.lane.b32.xlu0 %v1215, 95
      %v1366 = vpop.permute.xlu0 %1365
      %1367 = vrot.lane.b32.xlu0 %v1230, 95
      %v1368 = vpop.permute.xlu0 %1367
      %v1369 = vsel %vm360, %v1364, %v1366
      %v1370 = vsel %vm360, %v1366, %v1368
      %v1373 = vmul.f32 %v1359, %v1369
      %v1374 = vmul.f32 %v1360, %v1370
      %v1375 = vmul.f32 %v1361, %v1369
      %v1376 = vmul.f32 %v1362, %v1370
      %v1377 = vadd.f32 %v1355, %v1373
      %v1378 = vadd.f32 %v1356, %v1374
      %v1379 = vadd.f32 %v1357, %v1375
      %v1380 = vadd.f32 %v1358, %v1376
      %v1381 = vld [vmem:[%s784] sm:$0xff]
      %v1382 = vld [vmem:[%s784 + $0x8] sm:$0xff]
      %v1383 = vld [vmem:[%s784 + $0x10] sm:$0x3]
      %v1384 = vld [vmem:[%s784 + $0x18] sm:$0x3]
      %1385 = vrot.lane.b32.xlu0 %v1214, 94
      %v1386 = vpop.permute.xlu0 %1385
      %1387 = vrot.lane.b32.xlu0 %v1215, 94
      %v1388 = vpop.permute.xlu0 %1387
      %1389 = vrot.lane.b32.xlu0 %v1230, 94
      %v1390 = vpop.permute.xlu0 %1389
      %v1391 = vsel %vm384, %v1386, %v1388
      %v1392 = vsel %vm384, %v1388, %v1390
      %v1395 = vmul.f32 %v1381, %v1391
      %v1396 = vmul.f32 %v1382, %v1392
      %v1397 = vmul.f32 %v1383, %v1391
      %v1398 = vmul.f32 %v1384, %v1392
      %v1399 = vadd.f32 %v1377, %v1395
      %v1400 = vadd.f32 %v1378, %v1396
      %v1401 = vadd.f32 %v1379, %v1397
      %v1402 = vadd.f32 %v1380, %v1398
      %s1403 = scalar_lea.vmem %s177, 32
      %1404 = vst [vmem:[%s1403] sm:$0xff] %v1399
      %1405 = vst [vmem:[%s1403 + $0x8] sm:$0xff] %v1400
      %1406 = vst [vmem:[%s1403 + $0x10] sm:$0x3] %v1401
      %1407 = vst [vmem:[%s1403 + $0x18] sm:$0x3] %v1402
      %s1408 = smul.u32 2, %s14
      %p1409 = scmp.lt.s32.totalorder %s1408, 3
      %s1410 = scalar_select %p1409, %s1408, 3
      %s1411 = smul.addr %s1410, 4
      %s1412 = smul.addr %s1411, 8
      %s1413 = scalar_lea.vmem %s3, %s1412
      // Predicated region
      $region33: #{tpu_custom_call.1} parent=31 // pred_check
        %p1414 = pneg %p100
      $region34: #{tpu_custom_call.1} parent=31 // pred_check_branch
        %1416 = sbr.rel (%p1414) target = $region36
      $region35: #{tpu_custom_call.1} parent=31 // pred_region
        %s1417 = smul.u32 2, %s14
      $region36: #{tpu_custom_call.1} parent=31 // pred_fallthru
        _
    $region32: #{tpu_custom_call.1} parent=5 // pred_fallthru
      _
    %p1418 = scmp.le.s32.totalorder 2, %s9
    // Predicated region
    $region37: #{tpu_custom_call.1} parent=5 // pred_check
      %p1419 = pneg %p1418
    $region38: #{tpu_custom_call.1} parent=5 // pred_check_branch
      %1421 = sbr.rel (%p1419) target = $region40
    $region39: #{tpu_custom_call.1} parent=5 // pred_region
      %s1422 = ssub.s32 %s9, 2
      // Predicated region
      $region41: #{tpu_custom_call.1} parent=39 // pred_check
        %p1423 = pneg %p106
      $region42: #{tpu_custom_call.1} parent=39 // pred_check_branch
        %1425 = sbr.rel (%p1423) target = $region44
      $region43: #{tpu_custom_call.1} parent=39 // pred_region
        %s1426 = smul.u32 2, %s15
        %p1427 = scmp.lt.s32.totalorder %s1426, 3
        %s1428 = scalar_select %p1427, %s1426, 3
        %s1429 = smul.addr %s1428, 4
        %s1430 = smul.addr %s1429, 8
        %s1431 = scalar_lea.vmem %s3, %s1430
      $region44: #{tpu_custom_call.1} parent=39 // pred_fallthru
        _
    $region40: #{tpu_custom_call.1} parent=5 // pred_fallthru
      _
  $region6: #{tpu_custom_call.1} parent=0 // loop_footer
    %s13 = sadd.s32 1, %s9
  $region7: #{tpu_custom_call.1} parent=0 // loop_footer_branch
    %8 = sbr.rel target = $region3
  $region8: #{tpu_custom_call.1} parent=0 // loop_exit
    _

</llo_original>
